<compile_context>
chip_gen: v6e
topology: v6e:2x2x1
jax: 0.10.0
libtpu: 0.0.40
codegen_flags: <defaults>
</compile_context>

<pallas_src>
import math
from functools import partial

import jax
import jax.numpy as jnp
from jax.experimental import pallas as pl
from jax.experimental.pallas import tpu as pltpu


# --------------------------------------------------------------------------
# Kernel 1: flash-style scaled-dot-product attention for the "global" heads.
# Grid = (B, h_g, n_q_tiles, n_kv_tiles); refs are (tq, D) / (tk, D) tiles.
# --------------------------------------------------------------------------
def _flash_attn_kernel(q_ref, k_ref, v_ref, o_ref, m_sc, l_sc, acc_sc, *, scale):
    ki = pl.program_id(3)

    @pl.when(ki == 0)
    def _init():
        m_sc[...] = jnp.full_like(m_sc, -jnp.inf)
        l_sc[...] = jnp.zeros_like(l_sc)
        acc_sc[...] = jnp.zeros_like(acc_sc)

    # Fold 1/sqrt(d_k) into q (weak-typed mul keeps the input dtype); feed the
    # MXU native-precision operands with f32 accumulation.
    q = q_ref[...] * scale
    s = jax.lax.dot_general(
        q, k_ref[...], (((1,), (1,)), ((), ())),
        preferred_element_type=jnp.float32,
    )                                                        # (tq, tk) f32

    m_prev = m_sc[...]                                       # (tq, 1)
    m_new = jnp.maximum(m_prev, jnp.max(s, axis=-1, keepdims=True))
    alpha = jnp.exp(m_prev - m_new)
    p = jnp.exp(s - m_new)                                   # (tq, tk) f32
    l_sc[...] = alpha * l_sc[...] + jnp.sum(p, axis=-1, keepdims=True)
    acc_sc[...] = alpha * acc_sc[...] + jnp.dot(
        p.astype(v_ref.dtype), v_ref[...], preferred_element_type=jnp.float32
    )
    m_sc[...] = m_new

    @pl.when(ki == pl.num_programs(3) - 1)
    def _finalize():
        inv_l = pl.reciprocal(l_sc[...], approx=True)        # EUP, frees VALU
        o_ref[...] = (acc_sc[...] * inv_l).astype(o_ref.dtype)


def _global_attention(q, k, v, h_g):
    """Writes heads [0, h_g) of a full (B, H, L, D) output; heads >= h_g are
    left untouched (filled later, in place, by the local-conv kernel)."""
    B, H, L, D = q.shape
    scale = 1.0 / math.sqrt(D)
    # Tile sizes sized for the smallest-VMEM generation (v7x: 64 MiB physical).
    tq = 256 if L % 256 == 0 else L
    tk = 512 if L % 512 == 0 else L
    grid = (B, h_g, L // tq, L // tk)

    q_spec = pl.BlockSpec((None, None, tq, D), lambda b, h, qi, ki: (b, h, qi, 0))
    kv_spec = pl.BlockSpec((None, None, tk, D), lambda b, h, qi, ki: (b, h, ki, 0))
    o_spec = pl.BlockSpec((None, None, tq, D), lambda b, h, qi, ki: (b, h, qi, 0))

    return pl.pallas_call(
        partial(_flash_attn_kernel, scale=scale),
        out_shape=jax.ShapeDtypeStruct((B, H, L, D), q.dtype),
        grid=grid,
        in_specs=[q_spec, kv_spec, kv_spec],
        out_specs=o_spec,
        scratch_shapes=[
            pltpu.VMEM((tq, 1), jnp.float32),   # running max
            pltpu.VMEM((tq, 1), jnp.float32),   # running denom
            pltpu.VMEM((tq, D), jnp.float32),   # output accumulator
        ],
        compiler_params=pltpu.CompilerParams(
            dimension_semantics=("parallel", "parallel", "parallel", "arbitrary"),
            vmem_limit_bytes=32 * 1024 * 1024,
        ),
    )(q, k, v)


# --------------------------------------------------------------------------
# Kernel 2: per-head Conv1d(d_k -> d_k, "same" padding) + ReLU on the local
# heads' values.  One grid step = (local head, batch block).  The halo is
# handled in-kernel: each tap is a pltpu.roll (XLU sublane rotate) + boundary
# mask, so no wrapper-side jnp.pad / transposes are needed.
# --------------------------------------------------------------------------
def _conv_relu_kernel(x_ref, w_ref, b_ref, prev_ref, o_ref, *, K, pad):
    del prev_ref  # aliased previous output block; only present for in-place writeback
    n_b, L, D = x_ref.shape
    bias = b_ref[...].astype(jnp.float32)                    # (1, D) -> broadcasts over L
    row = jax.lax.broadcasted_iota(jnp.int32, (L, D), 0)

    for bi in range(n_b):                                    # static unroll over batch block
        x = x_ref[bi]                                        # (L, D)
        acc = jnp.zeros((L, D), jnp.float32)
        for k_tap in range(K):                               # static unroll over taps
            s = k_tap - pad                                  # sequence offset of this tap
            if s == 0:
                xk = x
            else:
                # xk[t] = x[t + s], zero outside [0, L).
                xk = pltpu.roll(x, shift=(-s) % L, axis=0)
                if s > 0:
                    xk = jnp.where(row < L - s, xk, jnp.zeros_like(xk))
                else:
                    xk = jnp.where(row >= -s, xk, jnp.zeros_like(xk))
            acc = acc + jnp.dot(xk, w_ref[k_tap],
                                preferred_element_type=jnp.float32)
        acc = acc + bias
        o_ref[bi] = jnp.maximum(acc, 0.0).astype(o_ref.dtype)


def _pick_batch_block(B, L, D, itemsize, budget_bytes=2 * 1024 * 1024):
    bb = B
    while bb > 1 and (B % bb != 0 or bb * L * D * itemsize > budget_bytes):
        bb -= 1
    return max(bb, 1)


def _local_conv_into(v, w_taps, bias2d, out_buf, h_g, kernel_size):
    """Conv+ReLU over heads [h_g, H), written in place into `out_buf` (aliased)."""
    B, H, L, D = v.shape
    Hl = H - h_g
    K = kernel_size
    pad = (K - 1) // 2
    b_blk = _pick_batch_block(B, L, D, jnp.dtype(v.dtype).itemsize)
    grid = (Hl, B // b_blk)

    x_spec = pl.BlockSpec((b_blk, None, L, D), lambda h, b: (b, h_g + h, 0, 0))
    w_spec = pl.BlockSpec((None, K, D, D), lambda h, b: (h, 0, 0, 0))
    b_spec = pl.BlockSpec((None, 1, D), lambda h, b: (h, 0, 0))
    o_spec = pl.BlockSpec((b_blk, None, L, D), lambda h, b: (b, h_g + h, 0, 0))

    return pl.pallas_call(
        partial(_conv_relu_kernel, K=K, pad=pad),
        out_shape=jax.ShapeDtypeStruct((B, H, L, D), out_buf.dtype),
        grid=grid,
        in_specs=[x_spec, w_spec, b_spec, o_spec],   # last input is the aliased buffer
        out_specs=o_spec,
        input_output_aliases={3: 0},                 # write local heads in place
        compiler_params=pltpu.CompilerParams(
            dimension_semantics=("parallel", "parallel"),
            vmem_limit_bytes=32 * 1024 * 1024,
        ),
    )(v, w_taps, bias2d, out_buf)


# --------------------------------------------------------------------------
# Forward (jitted so the output aliasing is realized in place).
# --------------------------------------------------------------------------
@partial(jax.jit, static_argnames=("h_g", "kernel_size"))
def _locker_forward(query, key, value, w_taps, bias2d, *, h_g, kernel_size):
    B, H, L, D = query.shape
    if h_g > 0:
        out = _global_attention(query, key, value, h_g)   # heads >= h_g unwritten yet
    else:
        out = jnp.zeros((B, H, L, D), query.dtype)
    if h_g < H:
        out = _local_conv_into(value, w_taps, bias2d, out, h_g, kernel_size)
    return out


class LockerAttentionPallas:
    def __init__(self, h, h_l, d_k, kernel_size=3, key=None):
        assert (kernel_size - 1) % 2 == 0
        self.h_g = h - h_l
        self.h_l = h_l
        self.d_k = d_k
        self.kernel_size = int(kernel_size)
        key = jax.random.PRNGKey(42) if key is None else key
        kw, kb = jax.random.split(key)
        # Deterministic init with PyTorch-Conv1d-like uniform bounds.
        fan_in = d_k * self.kernel_size
        bound = 1.0 / math.sqrt(fan_in)
        # PyTorch Conv1d weight layout: (out_channels, in_channels, K), per head.
        self.conv_weight = jax.random.uniform(
            kw, (h_l, d_k, d_k, self.kernel_size), jnp.float32, -bound, bound
        )
        self.conv_bias = jax.random.uniform(
            kb, (h_l, d_k), jnp.float32, -bound, bound
        )
        # Per-tap (D_in, D_out) matrices for the in-kernel shifted matmuls.
        self.conv_w_taps = jnp.transpose(self.conv_weight, (0, 3, 2, 1))  # (Hl, K, Din, Dout)
        self.conv_bias2d = self.conv_bias.reshape(h_l, 1, d_k)            # (Hl, 1, D)

    def __call__(self, query, key, value, mask=None, dropout=None):
        # TODO(synk): mask / dropout branches are not implemented (forward is
        # exercised with the default mask=None, dropout=None).
        if mask is not None or dropout is not None:
            raise NotImplementedError("mask/dropout are not supported in the Pallas port")
        return _locker_forward(
            query, key, value, self.conv_w_taps, self.conv_bias2d,
            h_g=self.h_g, kernel_size=self.kernel_size,
        )


# --------------------------------------------------------------------------
# Pure-JAX reference (mirrors the PyTorch forward) for a correctness check.
# --------------------------------------------------------------------------
def reference_forward(query, key, value, mod: LockerAttentionPallas):
    h_g, h_l, K = mod.h_g, mod.h_l, mod.kernel_size
    q_g, k_g, v_g = query[:, :h_g], key[:, :h_g], value[:, :h_g]
    v_l = value[:, h_g:]
    s = jnp.einsum("bhld,bhmd->bhlm", q_g, k_g) / math.sqrt(query.shape[-1])
    p = jax.nn.softmax(s, axis=-1)
    o_g = jnp.einsum("bhlm,bhmd->bhld", p, v_g)

    pad = (K - 1) // 2
    outs = []
    B, _, L, D = v_l.shape
    for i in range(h_l):
        x = v_l[:, i]                                         # (B, L, D)
        xp = jnp.pad(x, ((0, 0), (pad, pad), (0, 0)))
        w = mod.conv_weight[i]                                # (D_out, D_in, K)
        acc = jnp.zeros((B, L, D), jnp.float32) + mod.conv_bias[i]
        for k in range(K):
            acc = acc + jnp.einsum("bld,od->blo", xp[:, k:k + L, :], w[:, :, k])
        outs.append(jnp.maximum(acc, 0.0)[:, None])
    o_l = jnp.concatenate(outs, axis=1)
    return jnp.concatenate([o_g, o_l], axis=1)


if __name__ == "__main__":
    B, H, H_L, L, D = 2, 4, 2, 16, 32
    root = jax.random.PRNGKey(0)
    kq, kk, kv, kp = jax.random.split(root, 4)
    q = jax.random.normal(kq, (B, H, L, D), jnp.float32)
    k = jax.random.normal(kk, (B, H, L, D), jnp.float32)
    v = jax.random.normal(kv, (B, H, L, D), jnp.float32)

    mod = LockerAttentionPallas(h=H, h_l=H_L, d_k=D, kernel_size=3, key=kp)

    out = jax.block_until_ready(mod(q, k, v))

    ref = reference_forward(q, k, v, mod)
    assert out.shape == (B, H, L, D), out.shape
    max_err = float(jnp.max(jnp.abs(out - ref)))
    assert jnp.allclose(out, ref, rtol=5e-3, atol=5e-3), f"max_err={max_err}"

    print("KERNEL_OK")
</pallas_src>

<mosaic_0001>
module attributes {stable_mosaic.version = 11 : i64} {
  func.func @_conv_relu_kernel(%arg0: i32, %arg1: i32, %arg2: memref<2x1x16x32xf32, #tpu.memory_space<vmem>>, %arg3: memref<1x3x32x32xf32, #tpu.memory_space<vmem>>, %arg4: memref<1x1x32xf32, #tpu.memory_space<vmem>>, %arg5: memref<2x1x16x32xf32, #tpu.memory_space<vmem>>, %arg6: memref<2x1x16x32xf32, #tpu.memory_space<vmem>>) attributes {dimension_semantics = [#tpu.dimension_semantics<parallel>, #tpu.dimension_semantics<parallel>], iteration_bounds = array<i64: 2, 1>, scalar_prefetch = 0 : i64, scratch_operands = 0 : i64, tpu.core_type = #tpu.core_type<tc>, window_params = [{transform_indices = @transform_0, window_bounds = array<i64: 2, 1, 16, 32>}, {transform_indices = @transform_1, window_bounds = array<i64: 1, 3, 32, 32>}, {transform_indices = @transform_2, window_bounds = array<i64: 1, 1, 32>}, {transform_indices = @transform_3, window_bounds = array<i64: 2, 1, 16, 32>}, {transform_indices = @transform_4, window_bounds = array<i64: 2, 1, 16, 32>}]} {
    %c0 = arith.constant 0 : index
    %c0_0 = arith.constant 0 : index
    %c0_1 = arith.constant 0 : index
    %0 = vector.load %arg4[%c0, %c0_0, %c0_1] : memref<1x1x32xf32, #tpu.memory_space<vmem>>, vector<1x1x32xf32>
    %1 = vector.shape_cast %0 : vector<1x1x32xf32> to vector<1x32xf32>
    %2 = tpu.iota {dimensions = array<i32: 0>} : vector<16x32xi32>
    %c0_2 = arith.constant 0 : index
    %c0_3 = arith.constant 0 : index
    %c0_4 = arith.constant 0 : index
    %c0_5 = arith.constant 0 : index
    %3 = vector.load %arg2[%c0_2, %c0_3, %c0_4, %c0_5] : memref<2x1x16x32xf32, #tpu.memory_space<vmem>>, vector<1x1x16x32xf32>
    %4 = vector.shape_cast %3 : vector<1x1x16x32xf32> to vector<16x32xf32>
    %cst = arith.constant 0.000000e+00 : f32
    %5 = vector.broadcast %cst : f32 to vector<16x32xf32>
    %c1_i32 = arith.constant 1 : i32
    %6 = tpu.dynamic_rotate %4 by %c1_i32 dim 0 : vector<16x32xf32>, i32 -> vector<16x32xf32>
    %c1_i32_6 = arith.constant 1 : i32
    %7 = vector.broadcast %c1_i32_6 : i32 to vector<16x32xi32>
    %8 = arith.cmpi sge, %2, %7 : vector<16x32xi32>
    %cst_7 = arith.constant 0.000000e+00 : f32
    %9 = vector.broadcast %cst_7 : f32 to vector<16x32xf32>
    %10 = arith.select %8, %6, %9 : vector<16x32xi1>, vector<16x32xf32>
    %c0_8 = arith.constant 0 : index
    %c0_9 = arith.constant 0 : index
    %c0_10 = arith.constant 0 : index
    %c0_11 = arith.constant 0 : index
    %11 = vector.load %arg3[%c0_8, %c0_9, %c0_10, %c0_11] : memref<1x3x32x32xf32, #tpu.memory_space<vmem>>, vector<1x1x32x32xf32>
    %12 = vector.shape_cast %11 : vector<1x1x32x32xf32> to vector<32x32xf32>
    %cst_12 = arith.constant dense<0.000000e+00> : vector<16x32xf32>
    %13 = tpu.matmul %10, %12, %cst_12 {dimension_numbers = #tpu.dot_dimension_numbers<[1], [0], [0], [1], [0, 0, 1, 1], [], []>} : vector<16x32xf32>, vector<32x32xf32>, vector<16x32xf32> -> vector<16x32xf32>
    %14 = arith.addf %5, %13 : vector<16x32xf32>
    %c0_13 = arith.constant 0 : index
    %c1 = arith.constant 1 : index
    %c0_14 = arith.constant 0 : index
    %c0_15 = arith.constant 0 : index
    %15 = vector.load %arg3[%c0_13, %c1, %c0_14, %c0_15] : memref<1x3x32x32xf32, #tpu.memory_space<vmem>>, vector<1x1x32x32xf32>
    %16 = vector.shape_cast %15 : vector<1x1x32x32xf32> to vector<32x32xf32>
    %cst_16 = arith.constant dense<0.000000e+00> : vector<16x32xf32>
    %17 = tpu.matmul %4, %16, %cst_16 {dimension_numbers = #tpu.dot_dimension_numbers<[1], [0], [0], [1], [0, 0, 1, 1], [], []>} : vector<16x32xf32>, vector<32x32xf32>, vector<16x32xf32> -> vector<16x32xf32>
    %18 = arith.addf %14, %17 : vector<16x32xf32>
    %c15_i32 = arith.constant 15 : i32
    %19 = tpu.dynamic_rotate %4 by %c15_i32 dim 0 : vector<16x32xf32>, i32 -> vector<16x32xf32>
    %c15_i32_17 = arith.constant 15 : i32
    %20 = vector.broadcast %c15_i32_17 : i32 to vector<16x32xi32>
    %21 = arith.cmpi slt, %2, %20 : vector<16x32xi32>
    %cst_18 = arith.constant 0.000000e+00 : f32
    %22 = vector.broadcast %cst_18 : f32 to vector<16x32xf32>
    %23 = arith.select %21, %19, %22 : vector<16x32xi1>, vector<16x32xf32>
    %c0_19 = arith.constant 0 : index
    %c2 = arith.constant 2 : index
    %c0_20 = arith.constant 0 : index
    %c0_21 = arith.constant 0 : index
    %24 = vector.load %arg3[%c0_19, %c2, %c0_20, %c0_21] : memref<1x3x32x32xf32, #tpu.memory_space<vmem>>, vector<1x1x32x32xf32>
    %25 = vector.shape_cast %24 : vector<1x1x32x32xf32> to vector<32x32xf32>
    %cst_22 = arith.constant dense<0.000000e+00> : vector<16x32xf32>
    %26 = tpu.matmul %23, %25, %cst_22 {dimension_numbers = #tpu.dot_dimension_numbers<[1], [0], [0], [1], [0, 0, 1, 1], [], []>} : vector<16x32xf32>, vector<32x32xf32>, vector<16x32xf32> -> vector<16x32xf32>
    %27 = arith.addf %18, %26 : vector<16x32xf32>
    %28 = vector.broadcast %1 : vector<1x32xf32> to vector<16x32xf32>
    %29 = arith.addf %27, %28 : vector<16x32xf32>
    %cst_23 = arith.constant 0.000000e+00 : f32
    %30 = vector.broadcast %cst_23 : f32 to vector<16x32xf32>
    %31 = arith.maximumf %29, %30 : vector<16x32xf32>
    %c0_24 = arith.constant 0 : index
    %c0_25 = arith.constant 0 : index
    %c0_26 = arith.constant 0 : index
    %c0_27 = arith.constant 0 : index
    %32 = vector.load %arg6[%c0_24, %c0_25, %c0_26, %c0_27] : memref<2x1x16x32xf32, #tpu.memory_space<vmem>>, vector<1x1x16x32xf32>
    %33 = vector.shape_cast %32 : vector<1x1x16x32xf32> to vector<16x32xf32>
    %34 = vector.shape_cast %31 : vector<16x32xf32> to vector<1x1x16x32xf32>
    tpu.vector_store %arg6[%c0_24, %c0_25, %c0_26, %c0_27], %34 {strides = array<i32>} : memref<2x1x16x32xf32, #tpu.memory_space<vmem>>, vector<1x1x16x32xf32>,
    %c1_28 = arith.constant 1 : index
    %c0_29 = arith.constant 0 : index
    %c0_30 = arith.constant 0 : index
    %c0_31 = arith.constant 0 : index
    %35 = vector.load %arg2[%c1_28, %c0_29, %c0_30, %c0_31] : memref<2x1x16x32xf32, #tpu.memory_space<vmem>>, vector<1x1x16x32xf32>
    %36 = vector.shape_cast %35 : vector<1x1x16x32xf32> to vector<16x32xf32>
    %cst_32 = arith.constant 0.000000e+00 : f32
    %37 = vector.broadcast %cst_32 : f32 to vector<16x32xf32>
    %c1_i32_33 = arith.constant 1 : i32
    %38 = tpu.dynamic_rotate %36 by %c1_i32_33 dim 0 : vector<16x32xf32>, i32 -> vector<16x32xf32>
    %c1_i32_34 = arith.constant 1 : i32
    %39 = vector.broadcast %c1_i32_34 : i32 to vector<16x32xi32>
    %40 = arith.cmpi sge, %2, %39 : vector<16x32xi32>
    %cst_35 = arith.constant 0.000000e+00 : f32
    %41 = vector.broadcast %cst_35 : f32 to vector<16x32xf32>
    %42 = arith.select %40, %38, %41 : vector<16x32xi1>, vector<16x32xf32>
    %c0_36 = arith.constant 0 : index
    %c0_37 = arith.constant 0 : index
    %c0_38 = arith.constant 0 : index
    %c0_39 = arith.constant 0 : index
    %43 = vector.load %arg3[%c0_36, %c0_37, %c0_38, %c0_39] : memref<1x3x32x32xf32, #tpu.memory_space<vmem>>, vector<1x1x32x32xf32>
    %44 = vector.shape_cast %43 : vector<1x1x32x32xf32> to vector<32x32xf32>
    %cst_40 = arith.constant dense<0.000000e+00> : vector<16x32xf32>
    %45 = tpu.matmul %42, %44, %cst_40 {dimension_numbers = #tpu.dot_dimension_numbers<[1], [0], [0], [1], [0, 0, 1, 1], [], []>} : vector<16x32xf32>, vector<32x32xf32>, vector<16x32xf32> -> vector<16x32xf32>
    %46 = arith.addf %37, %45 : vector<16x32xf32>
    %c0_41 = arith.constant 0 : index
    %c1_42 = arith.constant 1 : index
    %c0_43 = arith.constant 0 : index
    %c0_44 = arith.constant 0 : index
    %47 = vector.load %arg3[%c0_41, %c1_42, %c0_43, %c0_44] : memref<1x3x32x32xf32, #tpu.memory_space<vmem>>, vector<1x1x32x32xf32>
    %48 = vector.shape_cast %47 : vector<1x1x32x32xf32> to vector<32x32xf32>
    %cst_45 = arith.constant dense<0.000000e+00> : vector<16x32xf32>
    %49 = tpu.matmul %36, %48, %cst_45 {dimension_numbers = #tpu.dot_dimension_numbers<[1], [0], [0], [1], [0, 0, 1, 1], [], []>} : vector<16x32xf32>, vector<32x32xf32>, vector<16x32xf32> -> vector<16x32xf32>
    %50 = arith.addf %46, %49 : vector<16x32xf32>
    %c15_i32_46 = arith.constant 15 : i32
    %51 = tpu.dynamic_rotate %36 by %c15_i32_46 dim 0 : vector<16x32xf32>, i32 -> vector<16x32xf32>
    %c15_i32_47 = arith.constant 15 : i32
    %52 = vector.broadcast %c15_i32_47 : i32 to vector<16x32xi32>
    %53 = arith.cmpi slt, %2, %52 : vector<16x32xi32>
    %cst_48 = arith.constant 0.000000e+00 : f32
    %54 = vector.broadcast %cst_48 : f32 to vector<16x32xf32>
    %55 = arith.select %53, %51, %54 : vector<16x32xi1>, vector<16x32xf32>
    %c0_49 = arith.constant 0 : index
    %c2_50 = arith.constant 2 : index
    %c0_51 = arith.constant 0 : index
    %c0_52 = arith.constant 0 : index
    %56 = vector.load %arg3[%c0_49, %c2_50, %c0_51, %c0_52] : memref<1x3x32x32xf32, #tpu.memory_space<vmem>>, vector<1x1x32x32xf32>
    %57 = vector.shape_cast %56 : vector<1x1x32x32xf32> to vector<32x32xf32>
    %cst_53 = arith.constant dense<0.000000e+00> : vector<16x32xf32>
    %58 = tpu.matmul %55, %57, %cst_53 {dimension_numbers = #tpu.dot_dimension_numbers<[1], [0], [0], [1], [0, 0, 1, 1], [], []>} : vector<16x32xf32>, vector<32x32xf32>, vector<16x32xf32> -> vector<16x32xf32>
    %59 = arith.addf %50, %58 : vector<16x32xf32>
    %60 = vector.broadcast %1 : vector<1x32xf32> to vector<16x32xf32>
    %61 = arith.addf %59, %60 : vector<16x32xf32>
    %cst_54 = arith.constant 0.000000e+00 : f32
    %62 = vector.broadcast %cst_54 : f32 to vector<16x32xf32>
    %63 = arith.maximumf %61, %62 : vector<16x32xf32>
    %c1_55 = arith.constant 1 : index
    %c0_56 = arith.constant 0 : index
    %c0_57 = arith.constant 0 : index
    %c0_58 = arith.constant 0 : index
    %64 = vector.load %arg6[%c1_55, %c0_56, %c0_57, %c0_58] : memref<2x1x16x32xf32, #tpu.memory_space<vmem>>, vector<1x1x16x32xf32>
    %65 = vector.shape_cast %64 : vector<1x1x16x32xf32> to vector<16x32xf32>
    %66 = vector.shape_cast %63 : vector<16x32xf32> to vector<1x1x16x32xf32>
    tpu.vector_store %arg6[%c1_55, %c0_56, %c0_57, %c0_58], %66 {strides = array<i32>} : memref<2x1x16x32xf32, #tpu.memory_space<vmem>>, vector<1x1x16x32xf32>,
    return
  }
  func.func @transform_0(%arg0: i32, %arg1: i32) -> (i32, i32, i32, i32) {
    %c2_i32 = arith.constant 2 : i32
    %0 = arith.addi %c2_i32, %arg0 : i32
    %c0_i32 = arith.constant 0 : i32
    %c0_i32_0 = arith.constant 0 : i32
    %c0_i32_1 = arith.constant 0 : i32
    return %arg1, %0, %c0_i32, %c0_i32_0 : i32, i32, i32, i32
  }
  func.func @transform_1(%arg0: i32, %arg1: i32) -> (i32, i32, i32, i32) {
    %c0_i32 = arith.constant 0 : i32
    %c0_i32_0 = arith.constant 0 : i32
    %c0_i32_1 = arith.constant 0 : i32
    %c0_i32_2 = arith.constant 0 : i32
    return %arg0, %c0_i32, %c0_i32_0, %c0_i32_1 : i32, i32, i32, i32
  }
  func.func @transform_2(%arg0: i32, %arg1: i32) -> (i32, i32, i32) {
    %c0_i32 = arith.constant 0 : i32
    %c0_i32_0 = arith.constant 0 : i32
    %c0_i32_1 = arith.constant 0 : i32
    return %arg0, %c0_i32, %c0_i32_0 : i32, i32, i32
  }
  func.func @transform_3(%arg0: i32, %arg1: i32) -> (i32, i32, i32, i32) {
    %c2_i32 = arith.constant 2 : i32
    %0 = arith.addi %c2_i32, %arg0 : i32
    %c0_i32 = arith.constant 0 : i32
    %c0_i32_0 = arith.constant 0 : i32
    %c0_i32_1 = arith.constant 0 : i32
    return %arg1, %0, %c0_i32, %c0_i32_0 : i32, i32, i32, i32
  }
  func.func @transform_4(%arg0: i32, %arg1: i32) -> (i32, i32, i32, i32) {
    %c2_i32 = arith.constant 2 : i32
    %0 = arith.addi %c2_i32, %arg0 : i32
    %c0_i32 = arith.constant 0 : i32
    %c0_i32_0 = arith.constant 0 : i32
    %c0_i32_1 = arith.constant 0 : i32
    return %arg1, %0, %c0_i32, %c0_i32_0 : i32, i32, i32, i32
  }
}

module attributes {stable_mosaic.version = 11 : i64} {
  func.func @_flash_attn_kernel(%arg0: i32, %arg1: i32, %arg2: i32, %arg3: i32, %arg4: memref<1x1x16x32xf32, #tpu.memory_space<vmem>>, %arg5: memref<1x1x16x32xf32, #tpu.memory_space<vmem>>, %arg6: memref<1x1x16x32xf32, #tpu.memory_space<vmem>>, %arg7: memref<1x1x16x32xf32, #tpu.memory_space<vmem>>, %arg8: memref<16x1xf32, #tpu.memory_space<vmem>>, %arg9: memref<16x1xf32, #tpu.memory_space<vmem>>, %arg10: memref<16x32xf32, #tpu.memory_space<vmem>>) attributes {dimension_semantics = [#tpu.dimension_semantics<parallel>, #tpu.dimension_semantics<parallel>, #tpu.dimension_semantics<parallel>, #tpu.dimension_semantics<arbitrary>], iteration_bounds = array<i64: 2, 2, 1, 1>, scalar_prefetch = 0 : i64, scratch_operands = 3 : i64, tpu.core_type = #tpu.core_type<tc>, window_params = [{transform_indices = @transform_0, window_bounds = array<i64: 1, 1, 16, 32>}, {transform_indices = @transform_1, window_bounds = array<i64: 1, 1, 16, 32>}, {transform_indices = @transform_2, window_bounds = array<i64: 1, 1, 16, 32>}, {transform_indices = @transform_3, window_bounds = array<i64: 1, 1, 16, 32>}]} {
    %c0_i32 = arith.constant 0 : i32
    %0 = arith.cmpi eq, %arg3, %c0_i32 : i32
    %1 = arith.extui %0 : i1 to i32
    %c0_i32_0 = arith.constant 0 : i32
    %2 = arith.cmpi ne, %1, %c0_i32_0 : i32
    scf.if %2 {
      %cst_30 = arith.constant 0xFF800000 : f32
      %37 = vector.broadcast %cst_30 : f32 to vector<16x1xf32>
      %c0_31 = arith.constant 0 : index
      %c0_32 = arith.constant 0 : index
      %38 = vector.load %arg8[%c0_31, %c0_32] : memref<16x1xf32, #tpu.memory_space<vmem>>, vector<16x1xf32>
      tpu.vector_store %arg8[%c0_31, %c0_32], %37 {strides = array<i32>} : memref<16x1xf32, #tpu.memory_space<vmem>>, vector<16x1xf32>,
      %cst_33 = arith.constant 0.000000e+00 : f32
      %39 = vector.broadcast %cst_33 : f32 to vector<16x1xf32>
      %c0_34 = arith.constant 0 : index
      %c0_35 = arith.constant 0 : index
      %40 = vector.load %arg9[%c0_34, %c0_35] : memref<16x1xf32, #tpu.memory_space<vmem>>, vector<16x1xf32>
      tpu.vector_store %arg9[%c0_34, %c0_35], %39 {strides = array<i32>} : memref<16x1xf32, #tpu.memory_space<vmem>>, vector<16x1xf32>,
      %cst_36 = arith.constant 0.000000e+00 : f32
      %41 = vector.broadcast %cst_36 : f32 to vector<16x32xf32>
      %c0_37 = arith.constant 0 : index
      %c0_38 = arith.constant 0 : index
      %42 = vector.load %arg10[%c0_37, %c0_38] : memref<16x32xf32, #tpu.memory_space<vmem>>, vector<16x32xf32>
      tpu.vector_store %arg10[%c0_37, %c0_38], %41 {strides = array<i32>} : memref<16x32xf32, #tpu.memory_space<vmem>>, vector<16x32xf32>,
    } else {
    }
    %c0 = arith.constant 0 : index
    %c0_1 = arith.constant 0 : index
    %c0_2 = arith.constant 0 : index
    %c0_3 = arith.constant 0 : index
    %3 = vector.load %arg4[%c0, %c0_1, %c0_2, %c0_3] : memref<1x1x16x32xf32, #tpu.memory_space<vmem>>, vector<1x1x16x32xf32>
    %4 = vector.shape_cast %3 : vector<1x1x16x32xf32> to vector<16x32xf32>
    %cst = arith.constant 0.176776692 : f32
    %5 = vector.broadcast %cst : f32 to vector<16x32xf32>
    %6 = arith.mulf %4, %5 : vector<16x32xf32>
    %c0_4 = arith.constant 0 : index
    %c0_5 = arith.constant 0 : index
    %c0_6 = arith.constant 0 : index
    %c0_7 = arith.constant 0 : index
    %7 = vector.load %arg5[%c0_4, %c0_5, %c0_6, %c0_7] : memref<1x1x16x32xf32, #tpu.memory_space<vmem>>, vector<1x1x16x32xf32>
    %8 = vector.shape_cast %7 : vector<1x1x16x32xf32> to vector<16x32xf32>
    %cst_8 = arith.constant dense<0.000000e+00> : vector<16x16xf32>
    %9 = tpu.matmul %6, %8, %cst_8 {dimension_numbers = #tpu.dot_dimension_numbers<[1], [1], [0], [0], [0, 0, 1, 0], [], []>} : vector<16x32xf32>, vector<16x32xf32>, vector<16x16xf32> -> vector<16x16xf32>
    %c0_9 = arith.constant 0 : index
    %c0_10 = arith.constant 0 : index
    %10 = vector.load %arg8[%c0_9, %c0_10] : memref<16x1xf32, #tpu.memory_space<vmem>>, vector<16x1xf32>
    %cst_11 = arith.constant dense<0xFF800000> : vector<16xf32>
    %11 = vector.multi_reduction <maximumf>, %9, %cst_11 [1] : vector<16x16xf32> to vector<16xf32>
    %12 = vector.shape_cast %11 : vector<16xf32> to vector<16x1xf32>
    %13 = arith.maximumf %10, %12 : vector<16x1xf32>
    %14 = arith.subf %10, %13 : vector<16x1xf32>
    %15 = math.exp %14 : vector<16x1xf32>
    %16 = vector.broadcast %13 : vector<16x1xf32> to vector<16x16xf32>
    %17 = arith.subf %9, %16 : vector<16x16xf32>
    %18 = math.exp %17 : vector<16x16xf32>
    %c0_12 = arith.constant 0 : index
    %c0_13 = arith.constant 0 : index
    %19 = vector.load %arg9[%c0_12, %c0_13] : memref<16x1xf32, #tpu.memory_space<vmem>>, vector<16x1xf32>
    %20 = arith.mulf %15, %19 : vector<16x1xf32>
    %cst_14 = arith.constant dense<0.000000e+00> : vector<16xf32>
    %21 = vector.multi_reduction <add>, %18, %cst_14 [1] : vector<16x16xf32> to vector<16xf32>
    %22 = vector.shape_cast %21 : vector<16xf32> to vector<16x1xf32>
    %23 = arith.addf %20, %22 : vector<16x1xf32>
    %c0_15 = arith.constant 0 : index
    %c0_16 = arith.constant 0 : index
    %24 = vector.load %arg9[%c0_15, %c0_16] : memref<16x1xf32, #tpu.memory_space<vmem>>, vector<16x1xf32>
    tpu.vector_store %arg9[%c0_15, %c0_16], %23 {strides = array<i32>} : memref<16x1xf32, #tpu.memory_space<vmem>>, vector<16x1xf32>,
    %c0_17 = arith.constant 0 : index
    %c0_18 = arith.constant 0 : index
    %25 = vector.load %arg10[%c0_17, %c0_18] : memref<16x32xf32, #tpu.memory_space<vmem>>, vector<16x32xf32>
    %26 = vector.broadcast %15 : vector<16x1xf32> to vector<16x32xf32>
    %27 = arith.mulf %26, %25 : vector<16x32xf32>
    %c0_19 = arith.constant 0 : index
    %c0_20 = arith.constant 0 : index
    %c0_21 = arith.constant 0 : index
    %c0_22 = arith.constant 0 : index
    %28 = vector.load %arg6[%c0_19, %c0_20, %c0_21, %c0_22] : memref<1x1x16x32xf32, #tpu.memory_space<vmem>>, vector<1x1x16x32xf32>
    %29 = vector.shape_cast %28 : vector<1x1x16x32xf32> to vector<16x32xf32>
    %cst_23 = arith.constant dense<0.000000e+00> : vector<16x32xf32>
    %30 = tpu.matmul %18, %29, %cst_23 {dimension_numbers = #tpu.dot_dimension_numbers<[1], [0], [0], [1], [0, 0, 1, 1], [], []>} : vector<16x16xf32>, vector<16x32xf32>, vector<16x32xf32> -> vector<16x32xf32>
    %31 = arith.addf %27, %30 : vector<16x32xf32>
    %c0_24 = arith.constant 0 : index
    %c0_25 = arith.constant 0 : index
    %32 = vector.load %arg10[%c0_24, %c0_25] : memref<16x32xf32, #tpu.memory_space<vmem>>, vector<16x32xf32>
    tpu.vector_store %arg10[%c0_24, %c0_25], %31 {strides = array<i32>} : memref<16x32xf32, #tpu.memory_space<vmem>>, vector<16x32xf32>,
    %c0_26 = arith.constant 0 : index
    %c0_27 = arith.constant 0 : index
    %33 = vector.load %arg8[%c0_26, %c0_27] : memref<16x1xf32, #tpu.memory_space<vmem>>, vector<16x1xf32>
    tpu.vector_store %arg8[%c0_26, %c0_27], %13 {strides = array<i32>} : memref<16x1xf32, #tpu.memory_space<vmem>>, vector<16x1xf32>,
    %c0_i32_28 = arith.constant 0 : i32
    %34 = arith.cmpi eq, %arg3, %c0_i32_28 : i32
    %35 = arith.extui %34 : i1 to i32
    %c0_i32_29 = arith.constant 0 : i32
    %36 = arith.cmpi ne, %35, %c0_i32_29 : i32
    scf.if %36 {
      %c0_30 = arith.constant 0 : index
      %c0_31 = arith.constant 0 : index
      %37 = vector.load %arg9[%c0_30, %c0_31] : memref<16x1xf32, #tpu.memory_space<vmem>>, vector<16x1xf32>
      %38 = tpu.reciprocal %37 {approx = true} : vector<16x1xf32> -> vector<16x1xf32>
      %c0_32 = arith.constant 0 : index
      %c0_33 = arith.constant 0 : index
      %39 = vector.load %arg10[%c0_32, %c0_33] : memref<16x32xf32, #tpu.memory_space<vmem>>, vector<16x32xf32>
      %40 = vector.broadcast %38 : vector<16x1xf32> to vector<16x32xf32>
      %41 = arith.mulf %39, %40 : vector<16x32xf32>
      %c0_34 = arith.constant 0 : index
      %c0_35 = arith.constant 0 : index
      %c0_36 = arith.constant 0 : index
      %c0_37 = arith.constant 0 : index
      %42 = vector.load %arg7[%c0_34, %c0_35, %c0_36, %c0_37] : memref<1x1x16x32xf32, #tpu.memory_space<vmem>>, vector<1x1x16x32xf32>
      %43 = vector.shape_cast %42 : vector<1x1x16x32xf32> to vector<16x32xf32>
      %44 = vector.shape_cast %41 : vector<16x32xf32> to vector<1x1x16x32xf32>
      tpu.vector_store %arg7[%c0_34, %c0_35, %c0_36, %c0_37], %44 {strides = array<i32>} : memref<1x1x16x32xf32, #tpu.memory_space<vmem>>, vector<1x1x16x32xf32>,
    } else {
    }
    return
  }
  func.func @transform_0(%arg0: i32, %arg1: i32, %arg2: i32, %arg3: i32) -> (i32, i32, i32, i32) {
    %c0_i32 = arith.constant 0 : i32
    %c0_i32_0 = arith.constant 0 : i32
    return %arg0, %arg1, %arg2, %c0_i32 : i32, i32, i32, i32
  }
  func.func @transform_1(%arg0: i32, %arg1: i32, %arg2: i32, %arg3: i32) -> (i32, i32, i32, i32) {
    %c0_i32 = arith.constant 0 : i32
    %c0_i32_0 = arith.constant 0 : i32
    return %arg0, %arg1, %arg3, %c0_i32 : i32, i32, i32, i32
  }
  func.func @transform_2(%arg0: i32, %arg1: i32, %arg2: i32, %arg3: i32) -> (i32, i32, i32, i32) {
    %c0_i32 = arith.constant 0 : i32
    %c0_i32_0 = arith.constant 0 : i32
    return %arg0, %arg1, %arg3, %c0_i32 : i32, i32, i32, i32
  }
  func.func @transform_3(%arg0: i32, %arg1: i32, %arg2: i32, %arg3: i32) -> (i32, i32, i32, i32) {
    %c0_i32 = arith.constant 0 : i32
    %c0_i32_0 = arith.constant 0 : i32
    return %arg0, %arg1, %arg2, %c0_i32 : i32, i32, i32, i32
  }
}

</mosaic_0001>

<llo_original>
// kernel: _locker_forward.2
$region0: #{_locker_forward.2}
  #allocation0 [shape = 'u32[]', space=smem, size = 0x4, offset = 0x4, fixed_abs, tag = 'smem constant byte address 0x4 - core index']
  #allocation1 [shape = 'u32[144,128]{1,0:T(1,128)}', space=vmem, size = 0x12000, scoped, tag = 'internal scratch']
  #allocation2 [shape = 'f32[16,1]{1,0:T(8,128)}', space=vmem, size = 0x2000, scoped, tag = 'scratch operand']
  #allocation3 [shape = 'f32[16,1]{1,0:T(8,128)}', space=vmem, size = 0x2000, scoped, tag = 'scratch operand']
  #allocation4 [shape = 'f32[16,32]{1,0:T(8,128)}', space=vmem, size = 0x2000, scoped, tag = 'scratch operand']
  %s0 = inlined_call_operand.hbm [shape: f32[2,4,16,32], index: 0, kind: input, shape index: {}]
  %s1 = inlined_call_operand.hbm [shape: f32[2,4,16,32], index: 1, kind: input, shape index: {}]
  %s2 = inlined_call_operand.hbm [shape: f32[2,4,16,32], index: 2, kind: input, shape index: {}]
  %s3 = inlined_call_operand.hbm [shape: f32[2,4,16,32], index: 3, kind: output, shape index: {}]
  %s4 = sld [smem:[#allocation0]]
  $region65: #{_locker_forward.2} parent=0
    _
  %s6 = ssub.s32 1, %s4
  %s7 = scalar_select 0, %s6, %s4
  $region1: #{_locker_forward.2} parent=0
    #allocation5 [shape = 'u8[16384]{0}', space=vmem, size = 0x4000, scoped, tag = 'input window, operand 0']
    #allocation6 [shape = 's32[2]{0}', space=sflag, size = 0x8, scoped, tag = 'scoped memory for _locker_forward.2']
    #allocation7 [shape = 's32[2]{0}', space=sflag, size = 0x8, scoped, tag = 'scoped memory for _locker_forward.2']
    #allocation8 [shape = 'u8[16384]{0}', space=vmem, size = 0x4000, scoped, tag = 'input window, operand 1']
    #allocation9 [shape = 's32[2]{0}', space=sflag, size = 0x8, scoped, tag = 'scoped memory for _locker_forward.2']
    #allocation10 [shape = 'u8[16384]{0}', space=vmem, size = 0x4000, scoped, tag = 'input window, operand 2']
    #allocation11 [shape = 'u8[16384]{0}', space=vmem, size = 0x4000, scoped, tag = 'output window, operand 0']
    %8 = vsyncpa [#allocation6], 0
    %s9 = scalar_lea.sflag [#allocation6], 1
    %10 = vsyncpa %s9, 0
    %11 = vsyncpa [#allocation9], 0
    %s12 = scalar_lea.sflag [#allocation9], 1
    %13 = vsyncpa %s12, 0
    %14 = vsyncpa [#allocation7], 0
    %s15 = scalar_lea.sflag [#allocation7], 1
    %16 = vsyncpa %s15, 0
    loop: start=0, step=1, limit=6
    $region2: #{_locker_forward.2} parent=1 // loop_pre_header
      _
    $region3: #{_locker_forward.2} parent=1 // loop_header
      %s18 = sphi 0, %s22
      %p19 = scmp.ge.s32.totalorder %s18, 6
      %s25 = sphi 0, %s51
      %s26 = sphi 0, %s47
      %s27 = sphi 0, %s43
      %s28 = sphi 0, %s39
      %s29 = sphi 0, %s25
      %s30 = sphi 0, %s26
      %s31 = sphi 0, %s27
      %s32 = sphi 0, %s28
      %s33 = sphi 0, %s29
      %s34 = sphi 0, %s30
      %s35 = sphi 0, %s31
      %s36 = sphi 0, %s32
      %s58 = sphi 0, %s60
      %s61 = sphi 0, %s58
      %s62 = sphi 0, %s61
      %s78 = sphi 0, %s62
      %s88 = sphi 0, %s90
      %s91 = sphi 0, %s88
      %s92 = sphi 0, %s91
      %s108 = sphi 0, %s92
      %s118 = sphi 0, %s120
      %s121 = sphi 0, %s118
      %s122 = sphi 0, %s121
      %s138 = sphi 0, %s122
      %s148 = sphi 0, %s150
      %s151 = sphi 0, %s148
      %s152 = sphi 0, %s151
      %s168 = sphi 0, %s152
    $region4: #{_locker_forward.2} parent=1 // loop_header_branch
      %21 = sbr.rel (%p19) target = $region8
    $region5: #{_locker_forward.2} parent=1 // loop_body
      %s23 = ssub.s32 %s18, 1
      %s24 = ssub.s32 %s18, 2
      %s37 = sadd.s32 1, %s28
      %p38 = scmp.ge.s32.totalorder %s37, 1
      %s39 = scalar_select %p38, 0, %s37
      %s40 = sadd.s32 1, %s27
      %s41 = scalar_select %p38, %s40, %s27
      %p42 = scmp.ge.s32.totalorder %s41, 1
      %s43 = scalar_select %p42, 0, %s41
      %s44 = sadd.s32 1, %s26
      %s45 = scalar_select %p42, %s44, %s26
      %p46 = scmp.ge.s32.totalorder %s45, 2
      %s47 = scalar_select %p46, 0, %s45
      %s48 = sadd.s32 1, %s25
      %s49 = scalar_select %p46, %s48, %s25
      %p50 = scmp.ge.s32.totalorder %s49, 2
      %s51 = scalar_select %p50, 0, %s49
      %s52 = ssub.s32 %s25, %s51
      %s53 = ssub.s32 %s26, %s47
      %s54 = sor.u32 %s52, %s53
      %s55 = ssub.s32 %s27, %s43
      %s56 = sor.u32 %s54, %s55
      %p57 = scmp.eq.s32.totalorder %s56, 0
      %s59 = sadd.s32 %s58, 1
      %s60 = scalar_select %p57, %s58, %s59
      %p63 = pneg %p57
      %p64 = scmp.eq.s32.totalorder %s18, 3
      %p65 = por %p63, %p64
      %p66 = scmp.ne.s32.totalorder %s58, %s61
      %p67 = scmp.eq.s32.totalorder %s18, 0
      %p68 = por %p66, %p67
      %p69 = scmp.ne.s32.totalorder %s58, %s61
      %p70 = scmp.eq.s32.totalorder %s23, 3
      %p71 = por %p69, %p70
      %p72 = scmp.ne.s32.totalorder %s61, %s62
      %p73 = scmp.eq.s32.totalorder %s23, 0
      %p74 = por %p72, %p73
      %p75 = scmp.ne.s32.totalorder %s61, %s62
      %p76 = scmp.eq.s32.totalorder %s24, 3
      %p77 = por %p75, %p76
      %p79 = scmp.ne.s32.totalorder %s62, %s78
      %p80 = scmp.eq.s32.totalorder %s24, 0
      %p81 = por %p79, %p80
      %s82 = ssub.s32 %s25, %s51
      %s83 = ssub.s32 %s26, %s47
      %s84 = sor.u32 %s82, %s83
      %s85 = ssub.s32 %s28, %s39
      %s86 = sor.u32 %s84, %s85
      %p87 = scmp.eq.s32.totalorder %s86, 0
      %s89 = sadd.s32 %s88, 1
      %s90 = scalar_select %p87, %s88, %s89
      %p93 = pneg %p87
      %p94 = scmp.eq.s32.totalorder %s18, 3
      %p95 = por %p93, %p94
      %p96 = scmp.ne.s32.totalorder %s88, %s91
      %p97 = scmp.eq.s32.totalorder %s18, 0
      %p98 = por %p96, %p97
      %p99 = scmp.ne.s32.totalorder %s88, %s91
      %p100 = scmp.eq.s32.totalorder %s23, 3
      %p101 = por %p99, %p100
      %p102 = scmp.ne.s32.totalorder %s91, %s92
      %p103 = scmp.eq.s32.totalorder %s23, 0
      %p104 = por %p102, %p103
      %p105 = scmp.ne.s32.totalorder %s91, %s92
      %p106 = scmp.eq.s32.totalorder %s24, 3
      %p107 = por %p105, %p106
      %p109 = scmp.ne.s32.totalorder %s92, %s108
      %p110 = scmp.eq.s32.totalorder %s24, 0
      %p111 = por %p109, %p110
      %s112 = ssub.s32 %s25, %s51
      %s113 = ssub.s32 %s26, %s47
      %s114 = sor.u32 %s112, %s113
      %s115 = ssub.s32 %s28, %s39
      %s116 = sor.u32 %s114, %s115
      %p117 = scmp.eq.s32.totalorder %s116, 0
      %s119 = sadd.s32 %s118, 1
      %s120 = scalar_select %p117, %s118, %s119
      %p123 = pneg %p117
      %p124 = scmp.eq.s32.totalorder %s18, 3
      %p125 = por %p123, %p124
      %p126 = scmp.ne.s32.totalorder %s118, %s121
      %p127 = scmp.eq.s32.totalorder %s18, 0
      %p128 = por %p126, %p127
      %p129 = scmp.ne.s32.totalorder %s118, %s121
      %p130 = scmp.eq.s32.totalorder %s23, 3
      %p131 = por %p129, %p130
      %p132 = scmp.ne.s32.totalorder %s121, %s122
      %p133 = scmp.eq.s32.totalorder %s23, 0
      %p134 = por %p132, %p133
      %p135 = scmp.ne.s32.totalorder %s121, %s122
      %p136 = scmp.eq.s32.totalorder %s24, 3
      %p137 = por %p135, %p136
      %p139 = scmp.ne.s32.totalorder %s122, %s138
      %p140 = scmp.eq.s32.totalorder %s24, 0
      %p141 = por %p139, %p140
      %s142 = ssub.s32 %s25, %s51
      %s143 = ssub.s32 %s26, %s47
      %s144 = sor.u32 %s142, %s143
      %s145 = ssub.s32 %s27, %s43
      %s146 = sor.u32 %s144, %s145
      %p147 = scmp.eq.s32.totalorder %s146, 0
      %s149 = sadd.s32 %s148, 1
      %s150 = scalar_select %p147, %s148, %s149
      %p153 = pneg %p147
      %p154 = scmp.eq.s32.totalorder %s18, 3
      %p155 = por %p153, %p154
      %p156 = scmp.ne.s32.totalorder %s148, %s151
      %p157 = scmp.eq.s32.totalorder %s18, 0
      %p158 = por %p156, %p157
      %p159 = scmp.ne.s32.totalorder %s148, %s151
      %p160 = scmp.eq.s32.totalorder %s23, 3
      %p161 = por %p159, %p160
      %p162 = scmp.ne.s32.totalorder %s151, %s152
      %p163 = scmp.eq.s32.totalorder %s23, 0
      %p164 = por %p162, %p163
      %p165 = scmp.ne.s32.totalorder %s151, %s152
      %p166 = scmp.eq.s32.totalorder %s24, 3
      %p167 = por %p165, %p166
      %p169 = scmp.ne.s32.totalorder %s152, %s168
      %p170 = scmp.eq.s32.totalorder %s24, 0
      %p171 = por %p169, %p170
      %p172 = scmp.le.s32.totalorder 1, %s18
      %p173 = scmp.lt.s32.totalorder %s18, 5
      %p174 = pnand %p172, %p173
      %p175 = pneg %p174
      // Predicated region
      $region9: #{_locker_forward.2} parent=5 // pred_check
        _
      $region10: #{_locker_forward.2} parent=5 // pred_check_branch
        %177 = sbr.rel (%p174) target = $region12
      $region11: #{_locker_forward.2} parent=5 // pred_region
        %s178 = ssub.s32 %s18, 1
      $region12: #{_locker_forward.2} parent=5 // pred_fallthru
        _
      %p179 = scmp.lt.s32.totalorder %s18, 4
      // Predicated region
      $region13: #{_locker_forward.2} parent=5 // pred_check
        %p180 = pneg %p179
      $region14: #{_locker_forward.2} parent=5 // pred_check_branch
        %182 = sbr.rel (%p180) target = $region16
      $region15: #{_locker_forward.2} parent=5 // pred_region
        // Predicated region
        $region17: #{_locker_forward.2} parent=15 // pred_check
          %p183 = pneg %p68
        $region18: #{_locker_forward.2} parent=15 // pred_check_branch
          %185 = sbr.rel (%p183) target = $region20
        $region19: #{_locker_forward.2} parent=15 // pred_region
          %s186 = sand.u32 %s58, 1
          %s187 = scalar_lea.sflag [#allocation6], %s186
          %s188 = sand.u32 %s58, 1
          %s189 = smul.addr %s188, 16
          %s190 = scalar_lea.vmem [#allocation5], %s189
          %s191 = smul.u32 2, %s27
          %s193 = ssub.s32 256, 256
          %194 = vsyncadd %s187, %s193
          %s195 = smul.addr %s26, 2
          %s196 = sadd.s32 %s191, %s195
          %s197 = smul.addr %s25, 8
          %s198 = sadd.s32 %s196, %s197
          %s199 = smul.addr %s198, 128
          %s200 = scalar_lea.hbm %s0, %s199
          %s201 = sshll.u32 %s190, 4
          %s202 = int_to_ptr.vmem [resolvable:$true] %s201
          %207 = dma.hbm_to_vmem [thread:$0]  %s200, 256, %s202, %s187, 128, 128, 8
        $region20: #{_locker_forward.2} parent=15 // pred_fallthru
          _
        // Predicated region
        $region21: #{_locker_forward.2} parent=15 // pred_check
          %p208 = pneg %p98
        $region22: #{_locker_forward.2} parent=15 // pred_check_branch
          %210 = sbr.rel (%p208) target = $region24
        $region23: #{_locker_forward.2} parent=15 // pred_region
          %s211 = sand.u32 %s18, 1
          %s212 = scalar_lea.sflag [#allocation9], %s211
          %s213 = sand.u32 %s88, 1
          %s214 = smul.addr %s213, 16
          %s215 = scalar_lea.vmem [#allocation8], %s214
          %s216 = smul.u32 2, %s28
          %s218 = ssub.s32 256, 256
          %219 = vsyncadd %s212, %s218
          %s220 = smul.addr %s26, 2
          %s221 = sadd.s32 %s216, %s220
          %s222 = smul.addr %s25, 8
          %s223 = sadd.s32 %s221, %s222
          %s224 = smul.addr %s223, 128
          %s225 = scalar_lea.hbm %s1, %s224
          %s226 = sshll.u32 %s215, 4
          %s227 = int_to_ptr.vmem [resolvable:$true] %s226
          %232 = dma.hbm_to_vmem [thread:$0]  %s225, 256, %s227, %s212, 128, 128, 8
        $region24: #{_locker_forward.2} parent=15 // pred_fallthru
          _
        // Predicated region
        $region25: #{_locker_forward.2} parent=15 // pred_check
          %p233 = pneg %p128
        $region26: #{_locker_forward.2} parent=15 // pred_check_branch
          %235 = sbr.rel (%p233) target = $region28
        $region27: #{_locker_forward.2} parent=15 // pred_region
          %s236 = sand.u32 %s18, 1
          %s237 = scalar_lea.sflag [#allocation9], %s236
          %s238 = sand.u32 %s118, 1
          %s239 = smul.addr %s238, 16
          %s240 = scalar_lea.vmem [#allocation10], %s239
          %s241 = smul.u32 2, %s28
          %s243 = ssub.s32 256, 256
          %244 = vsyncadd %s237, %s243
          %s245 = smul.addr %s26, 2
          %s246 = sadd.s32 %s241, %s245
          %s247 = smul.addr %s25, 8
          %s248 = sadd.s32 %s246, %s247
          %s249 = smul.addr %s248, 128
          %s250 = scalar_lea.hbm %s2, %s249
          %s251 = sshll.u32 %s240, 4
          %s252 = int_to_ptr.vmem [resolvable:$true] %s251
          %257 = dma.hbm_to_vmem [thread:$0]  %s250, 256, %s252, %s237, 128, 128, 8
        $region28: #{_locker_forward.2} parent=15 // pred_fallthru
          _
      $region16: #{_locker_forward.2} parent=5 // pred_fallthru
        _
      %p258 = scmp.le.s32.totalorder 1, %s18
      %p259 = scmp.lt.s32.totalorder %s18, 5
      %p260 = pnand %p258, %p259
      %p261 = pneg %p260
      // Predicated region
      $region29: #{_locker_forward.2} parent=5 // pred_check
        _
      $region30: #{_locker_forward.2} parent=5 // pred_check_branch
        %263 = sbr.rel (%p260) target = $region32
      $region31: #{_locker_forward.2} parent=5 // pred_region
        %s264 = ssub.s32 %s18, 1
        %s265 = sand.u32 %s61, 1
        %s266 = scalar_lea.sflag [#allocation6], %s265
        %s267 = sand.u32 %s61, 1
        %s268 = smul.addr %s267, 16
        %s269 = scalar_lea.vmem [#allocation5], %s268
        // Predicated region
        $region33: #{_locker_forward.2} parent=31 // pred_check
          %p270 = pneg %p74
        $region34: #{_locker_forward.2} parent=31 // pred_check_branch
          %272 = sbr.rel (%p270) target = $region36
        $region35: #{_locker_forward.2} parent=31 // pred_region
          %273 = dma.done %s266, 256
        $region36: #{_locker_forward.2} parent=31 // pred_fallthru
          _
        %s274 = sand.u32 %s23, 1
        %s275 = scalar_lea.sflag [#allocation9], %s274
        %s276 = sand.u32 %s91, 1
        %s277 = smul.addr %s276, 16
        %s278 = scalar_lea.vmem [#allocation8], %s277
        // Predicated region
        $region37: #{_locker_forward.2} parent=31 // pred_check
          %p279 = pneg %p104
        $region38: #{_locker_forward.2} parent=31 // pred_check_branch
          %281 = sbr.rel (%p279) target = $region40
        $region39: #{_locker_forward.2} parent=31 // pred_region
          %282 = dma.done %s275, 256
        $region40: #{_locker_forward.2} parent=31 // pred_fallthru
          _
        %s283 = sand.u32 %s23, 1
        %s284 = scalar_lea.sflag [#allocation9], %s283
        %s285 = sand.u32 %s121, 1
        %s286 = smul.addr %s285, 16
        %s287 = scalar_lea.vmem [#allocation10], %s286
        // Predicated region
        $region41: #{_locker_forward.2} parent=31 // pred_check
          %p288 = pneg %p134
        $region42: #{_locker_forward.2} parent=31 // pred_check_branch
          %290 = sbr.rel (%p288) target = $region44
        $region43: #{_locker_forward.2} parent=31 // pred_region
          %291 = dma.done %s284, 256
        $region44: #{_locker_forward.2} parent=31 // pred_fallthru
          _
        %s292 = sand.u32 %s61, 1
        %s293 = scalar_lea.sflag [#allocation6], %s292
        %s294 = sand.u32 %s61, 1
        %s295 = smul.addr %s294, 16
        %s296 = scalar_lea.vmem [#allocation5], %s295
        %p297 = pneg %p74
        %p298 = pneg %p71
        %s299 = sand.u32 %s23, 1
        %s300 = scalar_lea.sflag [#allocation9], %s299
        %s301 = sand.u32 %s91, 1
        %s302 = smul.addr %s301, 16
        %s303 = scalar_lea.vmem [#allocation8], %s302
        %p304 = pneg %p104
        %p305 = pneg %p101
        %s306 = sand.u32 %s23, 1
        %s307 = scalar_lea.sflag [#allocation9], %s306
        %s308 = sand.u32 %s121, 1
        %s309 = smul.addr %s308, 16
        %s310 = scalar_lea.vmem [#allocation10], %s309
        %p311 = pneg %p134
        %p312 = pneg %p131
        %p313 = pneg %p164
        %p314 = pneg %p161
        %s315 = sand.u32 %s151, 1
        %s316 = scalar_lea.sflag [#allocation7], %s315
        %s317 = sand.u32 %s151, 1
        %s318 = smul.addr %s317, 16
        %s319 = scalar_lea.vmem [#allocation11], %s318
        %s320 = smul.u32 2, %s31
        %s321 = smul.u32 2, %s32
        %s322 = smul.u32 2, %s32
        %s323 = smul.u32 2, %s31
        %p324 = scmp.eq.s32.totalorder %s32, 0
        // Predicated region
        $region45: #{_locker_forward.2} parent=31 // pred_check
          %p325 = pneg %p324
        $region46: #{_locker_forward.2} parent=31 // pred_check_branch
          %327 = sbr.rel (%p325) target = $region48
        $region47: #{_locker_forward.2} parent=31 // pred_region
          %vm328 = vcmask 7168
          %329 = vst.msk [vmem:[#allocation2] sm:$0xff] %vm328, -inf
          %330 = vst.msk [vmem:[#allocation2 + $0x8] sm:$0xff] %vm328, -inf
          %331 = vst.msk [vmem:[#allocation3] sm:$0xff] %vm328, 0.0
          %332 = vst.msk [vmem:[#allocation3 + $0x8] sm:$0xff] %vm328, 0.0
          %vm333 = vcmask 261120
          %334 = vst.msk [vmem:[#allocation4] sm:$0xff] %vm333, 0.0
          %335 = vst.msk [vmem:[#allocation4 + $0x8] sm:$0xff] %vm333, 0.0
        $region48: #{_locker_forward.2} parent=31 // pred_fallthru
          _
        %v336 = vld [vmem:[%s269] sm:$0xff]
        %v337 = vld [vmem:[%s269 + $0x8] sm:$0xff]
        %v338 = vmul.f32 %v336, 0.17677669
        %v339 = vmul.f32 %v337, 0.17677669
        %v340 = vld [vmem:[%s278] sm:$0xff]
        %v341 = vld [vmem:[%s278 + $0x8] sm:$0xff]
        %vm342 = vcmask 261120
        %v344 = vsel %vm342, %v338, 0
        %v347 = vsel %vm342, %v339, 0
        %v350 = vsel %vm342, %v340, 0
        %v353 = vsel %vm342, %v341, 0
        %355 = vmatprep.subr.mxu0 0.0
        %356 = vmatpush1.xpose.msra.mxu0 0.0
        %357 = vmatprep.subr.mxu0 0.0
        %358 = vmatpush1.xpose.msra.mxu0 0.0
        %359 = vmatprep.subr.mxu0 0.0
        %360 = vmatpush1.xpose.msra.mxu0 0.0
        %361 = vmatprep.subr.mxu0 0.0
        %362 = vmatpush1.xpose.msra.mxu0 0.0
        %363 = vmatprep.subr.mxu0 0.0
        %364 = vmatpush1.xpose.msra.mxu0 0.0
        %365 = vmatprep.subr.mxu0 0.0
        %366 = vmatpush1.xpose.msra.mxu0 0.0
        %367 = vmatprep.subr.mxu0 0.0
        %368 = vmatpush1.xpose.msra.mxu0 0.0
        %369 = vmatprep.subr.mxu0 0.0
        %370 = vmatpush1.xpose.msra.mxu0 0.0
        %371 = vmatprep.subr.mxu0 0.0
        %372 = vmatpush1.xpose.msra.mxu0 0.0
        %373 = vmatprep.subr.mxu0 0.0
        %374 = vmatpush1.xpose.msra.mxu0 0.0
        %375 = vmatprep.subr.mxu0 0.0
        %376 = vmatpush1.xpose.msra.mxu0 0.0
        %377 = vmatprep.subr.mxu0 0.0
        %378 = vmatpush1.xpose.msra.mxu0 0.0
        %379 = vmatprep.subr.mxu0 0.0
        %380 = vmatpush1.xpose.msra.mxu0 0.0
        %381 = vmatprep.subr.mxu0 0.0
        %382 = vmatpush1.xpose.msra.mxu0 0.0
        %383 = vmatprep.subr.mxu0 0.0
        %384 = vmatpush1.xpose.msra.mxu0 %v353
        %385 = vmatprep.subr.mxu0 0.0
        %386 = vmatpush1.xpose.msra.mxu0 %v350
        %387 = vmatprep.subr.mxu0 0.0
        %388 = vmatpush2.xpose.msra.mxu0 0.0
        %389 = vmatprep.subr.mxu0 0.0
        %390 = vmatpush2.xpose.msra.mxu0 0.0
        %391 = vmatprep.subr.mxu0 0.0
        %392 = vmatpush2.xpose.msra.mxu0 0.0
        %393 = vmatprep.subr.mxu0 0.0
        %394 = vmatpush2.xpose.msra.mxu0 0.0
        %395 = vmatprep.subr.mxu0 0.0
        %396 = vmatpush2.xpose.msra.mxu0 0.0
        %397 = vmatprep.subr.mxu0 0.0
        %398 = vmatpush2.xpose.msra.mxu0 0.0
        %399 = vmatprep.subr.mxu0 0.0
        %400 = vmatpush2.xpose.msra.mxu0 0.0
        %401 = vmatprep.subr.mxu0 0.0
        %402 = vmatpush2.xpose.msra.mxu0 0.0
        %403 = vmatprep.subr.mxu0 0.0
        %404 = vmatpush2.xpose.msra.mxu0 0.0
        %405 = vmatprep.subr.mxu0 0.0
        %406 = vmatpush2.xpose.msra.mxu0 0.0
        %407 = vmatprep.subr.mxu0 0.0
        %408 = vmatpush2.xpose.msra.mxu0 0.0
        %409 = vmatprep.subr.mxu0 0.0
        %410 = vmatpush2.xpose.msra.mxu0 0.0
        %411 = vmatprep.subr.mxu0 0.0
        %412 = vmatpush2.xpose.msra.mxu0 0.0
        %413 = vmatprep.subr.mxu0 0.0
        %414 = vmatpush2.xpose.msra.mxu0 0.0
        %415 = vmatprep.subr.mxu0 0.0
        %416 = vmatpush2.xpose.msra.mxu0 0.0
        %417 = vmatprep.subr.mxu0 0.0
        %418 = vmatpush2.xpose.msra.mxu0 0.0
        %419 = vmatprep.mubr.f32.mxu0 0.0
        %420 = vmatmul.mubr.f32.gmra.mxu0 %v344
        %v421 = vpop.f32.mrf.mxu0
        %v422 = vadd.f32 0.0, %v421
        %v423 = vpop.f32.mrf.mxu0
        %424 = vmatprep.mubr.f32.mxu0 0.0
        %425 = vmatmul.mubr.f32.gmra.mxu0 %v347
        %v426 = vpop.f32.mrf.mxu0
        %v427 = vadd.f32 0.0, %v426
        %v428 = vpop.f32.mrf.mxu0
        %429 = vdwg.mxu0
        %v430 = vld [vmem:[#allocation2] sm:$0xff]
        %v431 = vld [vmem:[#allocation2 + $0x8] sm:$0xff]
        %vm432 = vcmask 130048
        %v433 = vsel %vm432, %v422, -inf
        %434 = vmax.xlane.f32.xlu0 %v433
        %v435 = vpop.xlane.xlu0 %434
        %v436 = vsel %vm432, %v427, -inf
        %437 = vmax.xlane.f32.xlu0 %v436
        %v438 = vpop.xlane.xlu0 %437
        %v439 = vmax.f32 %v430, %v435
        %v440 = vmax.f32 %v431, %v438
        %v441 = vsub.f32 %v430, %v439
        %v442 = vsub.f32 %v431, %v440
        %v443 = vmul.f32 %v441, 1.442695
        %v444 = vpow.pop %v443
        %v445 = vmul.f32 %v442, 1.442695
        %v446 = vpow.pop %v445
        %448 = vset.pattern.permute.xlu0 0
        %449 = vperm.xlu0 %448, %v439
        %v450 = vpop.permute.xlu0 %449
        %453 = vset.pattern.permute.xlu0 0
        %454 = vperm.xlu0 %453, %v440
        %v455 = vpop.permute.xlu0 %454
        %v457 = vsub.f32 %v422, %v450
        %v458 = vsub.f32 %v427, %v455
        %v459 = vmul.f32 %v457, 1.442695
        %v460 = vpow.pop %v459
        %v461 = vmul.f32 %v458, 1.442695
        %v462 = vpow.pop %v461
        %v463 = vld [vmem:[#allocation3] sm:$0xff]
        %v464 = vld [vmem:[#allocation3 + $0x8] sm:$0xff]
        %v465 = vmul.f32 %v444, %v463
        %v466 = vmul.f32 %v446, %v464
        %v467 = vsel %vm432, %v460, 0.0
        %468 = vadd.xlane.f32.xlu0 %v467
        %v469 = vpop.xlane.xlu0 %468
        %v470 = vsel %vm432, %v462, 0.0
        %471 = vadd.xlane.f32.xlu0 %v470
        %v472 = vpop.xlane.xlu0 %471
        %v473 = vadd.f32 %v465, %v469
        %v474 = vadd.f32 %v466, %v472
        %vm475 = vcmask 7168
        %476 = vst.msk [vmem:[#allocation3] sm:$0xff] %vm475, %v473
        %477 = vst.msk [vmem:[#allocation3 + $0x8] sm:$0xff] %vm475, %v474
        %v478 = vld [vmem:[#allocation4] sm:$0xff]
        %v479 = vld [vmem:[#allocation4 + $0x8] sm:$0xff]
        %481 = vset.pattern.permute.xlu0 0
        %482 = vperm.xlu0 %481, %v444
        %v483 = vpop.permute.xlu0 %482
        %486 = vset.pattern.permute.xlu0 0
        %487 = vperm.xlu0 %486, %v446
        %v488 = vpop.permute.xlu0 %487
        %v490 = vmul.f32 %v483, %v478
        %v491 = vmul.f32 %v488, %v479
        %v492 = vld [vmem:[%s287] sm:$0xff]
        %v493 = vld [vmem:[%s287 + $0x8] sm:$0xff]
        %v495 = vsel %vm432, %v460, 0
        %v498 = vsel %vm432, %v462, 0
        %500 = vmatprep.subr.mxu0 0.0
        %501 = vmatpush1.msra.mxu0 0.0
        %502 = vmatprep.subr.mxu0 0.0
        %503 = vmatpush1.msra.mxu0 0.0
        %504 = vmatprep.subr.mxu0 0.0
        %505 = vmatpush1.msra.mxu0 0.0
        %506 = vmatprep.subr.mxu0 0.0
        %507 = vmatpush1.msra.mxu0 0.0
        %508 = vmatprep.subr.mxu0 0.0
        %509 = vmatpush1.msra.mxu0 0.0
        %510 = vmatprep.subr.mxu0 0.0
        %511 = vmatpush1.msra.mxu0 0.0
        %512 = vmatprep.subr.mxu0 0.0
        %513 = vmatpush1.msra.mxu0 0.0
        %514 = vmatprep.subr.mxu0 0.0
        %515 = vmatpush1.msra.mxu0 0.0
        %516 = vmatprep.subr.mxu0 0.0
        %517 = vmatpush1.msra.mxu0 0.0
        %518 = vmatprep.subr.mxu0 0.0
        %519 = vmatpush1.msra.mxu0 0.0
        %520 = vmatprep.subr.mxu0 0.0
        %521 = vmatpush1.msra.mxu0 0.0
        %522 = vmatprep.subr.mxu0 0.0
        %523 = vmatpush1.msra.mxu0 0.0
        %524 = vmatprep.subr.mxu0 0.0
        %525 = vmatpush1.msra.mxu0 0.0
        %526 = vmatprep.subr.mxu0 0.0
        %527 = vmatpush1.msra.mxu0 0.0
        %528 = vmatprep.subr.mxu0 0.0
        %529 = vmatpush1.msra.mxu0 %v493
        %530 = vmatprep.subr.mxu0 0.0
        %531 = vmatpush1.msra.mxu0 %v492
        %532 = vmatprep.subr.mxu0 0.0
        %533 = vmatpush2.msra.mxu0 0.0
        %534 = vmatprep.subr.mxu0 0.0
        %535 = vmatpush2.msra.mxu0 0.0
        %536 = vmatprep.subr.mxu0 0.0
        %537 = vmatpush2.msra.mxu0 0.0
        %538 = vmatprep.subr.mxu0 0.0
        %539 = vmatpush2.msra.mxu0 0.0
        %540 = vmatprep.subr.mxu0 0.0
        %541 = vmatpush2.msra.mxu0 0.0
        %542 = vmatprep.subr.mxu0 0.0
        %543 = vmatpush2.msra.mxu0 0.0
        %544 = vmatprep.subr.mxu0 0.0
        %545 = vmatpush2.msra.mxu0 0.0
        %546 = vmatprep.subr.mxu0 0.0
        %547 = vmatpush2.msra.mxu0 0.0
        %548 = vmatprep.subr.mxu0 0.0
        %549 = vmatpush2.msra.mxu0 0.0
        %550 = vmatprep.subr.mxu0 0.0
        %551 = vmatpush2.msra.mxu0 0.0
        %552 = vmatprep.subr.mxu0 0.0
        %553 = vmatpush2.msra.mxu0 0.0
        %554 = vmatprep.subr.mxu0 0.0
        %555 = vmatpush2.msra.mxu0 0.0
        %556 = vmatprep.subr.mxu0 0.0
        %557 = vmatpush2.msra.mxu0 0.0
        %558 = vmatprep.subr.mxu0 0.0
        %559 = vmatpush2.msra.mxu0 0.0
        %560 = vmatprep.subr.mxu0 0.0
        %561 = vmatpush2.msra.mxu0 0.0
        %562 = vmatprep.subr.mxu0 0.0
        %563 = vmatpush2.msra.mxu0 0.0
        %564 = vmatprep.mubr.f32.mxu0 0.0
        %565 = vmatmul.mubr.f32.gmra.mxu0 %v495
        %v566 = vpop.f32.mrf.mxu0
        %v567 = vadd.f32 0.0, %v566
        %v568 = vpop.f32.mrf.mxu0
        %569 = vmatprep.mubr.f32.mxu0 0.0
        %570 = vmatmul.mubr.f32.gmra.mxu0 %v498
        %v571 = vpop.f32.mrf.mxu0
        %v572 = vadd.f32 0.0, %v571
        %v573 = vpop.f32.mrf.mxu0
        %574 = vdwg.mxu0
        %v575 = vadd.f32 %v490, %v567
        %v576 = vadd.f32 %v491, %v572
        %577 = vst.msk [vmem:[#allocation4] sm:$0xff] %vm342, %v575
        %578 = vst.msk [vmem:[#allocation4 + $0x8] sm:$0xff] %vm342, %v576
        %579 = vst.msk [vmem:[#allocation2] sm:$0xff] %vm475, %v439
        %580 = vst.msk [vmem:[#allocation2 + $0x8] sm:$0xff] %vm475, %v440
        // Predicated region
        $region49: #{_locker_forward.2} parent=31 // pred_check
          %p581 = pneg %p324
        $region50: #{_locker_forward.2} parent=31 // pred_check_branch
          %583 = sbr.rel (%p581) target = $region52
        $region51: #{_locker_forward.2} parent=31 // pred_region
          %v584 = vld [vmem:[#allocation3] sm:$0xff]
          %v585 = vld [vmem:[#allocation3 + $0x8] sm:$0xff]
          %v586 = vrcp.pop %v584
          %v587 = vrcp.pop %v585
          %v588 = vld [vmem:[#allocation4] sm:$0xff]
          %v589 = vld [vmem:[#allocation4 + $0x8] sm:$0xff]
          %591 = vset.pattern.permute.xlu0 0
          %592 = vperm.xlu0 %591, %v586
          %v593 = vpop.permute.xlu0 %592
          %596 = vset.pattern.permute.xlu0 0
          %597 = vperm.xlu0 %596, %v587
          %v598 = vpop.permute.xlu0 %597
          %v600 = vmul.f32 %v588, %v593
          %v601 = vmul.f32 %v589, %v598
          %602 = vst.msk [vmem:[%s319] sm:$0xff] %vm342, %v600
          %603 = vst.msk [vmem:[%s319 + $0x8] sm:$0xff] %vm342, %v601
        $region52: #{_locker_forward.2} parent=31 // pred_fallthru
          _
        %s604 = sand.u32 %s151, 1
        %s605 = scalar_lea.sflag [#allocation7], %s604
        %s606 = sand.u32 %s151, 1
        %s607 = smul.addr %s606, 16
        %s608 = scalar_lea.vmem [#allocation11], %s607
        // Predicated region
        $region53: #{_locker_forward.2} parent=31 // pred_check
          %p609 = pneg %p161
        $region54: #{_locker_forward.2} parent=31 // pred_check_branch
          %611 = sbr.rel (%p609) target = $region56
        $region55: #{_locker_forward.2} parent=31 // pred_region
          %s612 = smul.u32 2, %s31
          %s614 = ssub.s32 256, 256
          %615 = vsyncadd %s605, %s614
          %s616 = smul.addr %s30, 2
          %s617 = sadd.s32 %s612, %s616
          %s618 = smul.addr %s29, 8
          %s619 = sadd.s32 %s617, %s618
          %s620 = smul.addr %s619, 128
          %s621 = scalar_lea.hbm %s3, %s620
          %s622 = sshll.u32 %s608, 4
          %s623 = int_to_ptr.vmem [resolvable:$true] %s622
          %628 = dma.vmem_to_hbm [thread:$0]  %s623, 256, %s621, %s605, 128, 128, 8
        $region56: #{_locker_forward.2} parent=31 // pred_fallthru
          _
      $region32: #{_locker_forward.2} parent=5 // pred_fallthru
        _
      %p629 = scmp.le.s32.totalorder 2, %s18
      // Predicated region
      $region57: #{_locker_forward.2} parent=5 // pred_check
        %p630 = pneg %p629
      $region58: #{_locker_forward.2} parent=5 // pred_check_branch
        %632 = sbr.rel (%p630) target = $region60
      $region59: #{_locker_forward.2} parent=5 // pred_region
        %s633 = ssub.s32 %s18, 2
        // Predicated region
        $region61: #{_locker_forward.2} parent=59 // pred_check
          %p634 = pneg %p167
        $region62: #{_locker_forward.2} parent=59 // pred_check_branch
          %636 = sbr.rel (%p634) target = $region64
        $region63: #{_locker_forward.2} parent=59 // pred_region
          %s637 = sand.u32 %s152, 1
          %s638 = scalar_lea.sflag [#allocation7], %s637
          %s639 = sand.u32 %s152, 1
          %s640 = smul.addr %s639, 16
          %s641 = scalar_lea.vmem [#allocation11], %s640
          %642 = dma.done %s638, 256
        $region64: #{_locker_forward.2} parent=59 // pred_fallthru
          _
      $region60: #{_locker_forward.2} parent=5 // pred_fallthru
        _
    $region6: #{_locker_forward.2} parent=1 // loop_footer
      %s22 = sadd.s32 1, %s18
    $region7: #{_locker_forward.2} parent=1 // loop_footer_branch
      %17 = sbr.rel target = $region3
    $region8: #{_locker_forward.2} parent=1 // loop_exit
      _
    %643 = vsyncpa [#allocation6], 1
    %s644 = scalar_lea.sflag [#allocation6], 1
    %645 = vsyncpa %s644, 1
    %646 = vsyncpa [#allocation9], 1
    %s647 = scalar_lea.sflag [#allocation9], 1
    %648 = vsyncpa %s647, 1
    %649 = vsyncpa [#allocation7], 1
    %s650 = scalar_lea.sflag [#allocation7], 1
    %651 = vsyncpa %s650, 1

// kernel: _locker_forward.3
$region0: #{_locker_forward.3}
  #allocation0 [shape = 'u32[]', space=smem, size = 0x4, offset = 0x4, fixed_abs, tag = 'smem constant byte address 0x4 - core index']
  #allocation1 [shape = 'u32[144,128]{1,0:T(1,128)}', space=vmem, size = 0x12000, scoped, tag = 'internal scratch']
  #allocation7 [shape = 's32[]', space=sflag, size = 0x4, offset = 0, fixed_abs, tag = 'sflag constant byte address 0x0 - dummy sync flag']
  #allocation9 [shape = 's32[]', space=sflag, size = 0x4, offset = 0, fixed_abs, tag = 'sflag constant byte address 0x0 - dummy sync flag']
  %s0 = inlined_call_operand.vmem [shape: f32[2,4,16,32], index: 0, kind: input, shape index: {}]
  %s1 = inlined_call_operand.vmem [shape: f32[2,3,32,32], index: 1, kind: input, shape index: {}]
  %s2 = inlined_call_operand.vmem [shape: f32[2,1,32], index: 2, kind: input, shape index: {}]
  %s3 = inlined_call_operand.hbm [shape: f32[2,4,16,32], index: 3, kind: input, shape index: {}, may-alias: {3,4}]
  %s4 = inlined_call_operand.hbm [shape: f32[2,4,16,32], index: 4, kind: output, shape index: {}, may-alias: {3,4}]
  %s5 = sld [smem:[#allocation0]]
  $region91: #{_locker_forward.3} parent=0
    _
  %s7 = ssub.s32 1, %s5
  %s8 = scalar_select 0, %s7, %s5
  $region1: #{_locker_forward.3} parent=0
    #allocation2 [shape = 'u8[32768]{0}', space=vmem, size = 0x8000, scoped, tag = 'input window, operand 0']
    #allocation3 [shape = 'u8[32768]{0}', space=vmem, size = 0x8000, scoped, tag = 'input window, operand 3']
    #allocation4 [shape = 's32[2]{0}', space=sflag, size = 0x8, scoped, tag = 'scoped memory for _locker_forward.3']
    #allocation5 [shape = 's32[2]{0}', space=sflag, size = 0x8, scoped, tag = 'scoped memory for _locker_forward.3']
    #allocation6 [shape = 'u8[32768]{0}', space=vmem, size = 0x8000, scoped, tag = 'output window, operand 0']
    %9 = vsyncpa [#allocation4], 0
    %s10 = scalar_lea.sflag [#allocation4], 1
    %11 = vsyncpa %s10, 0
    %12 = vsyncpa [#allocation5], 0
    %s13 = scalar_lea.sflag [#allocation5], 1
    %14 = vsyncpa %s13, 0
    loop: start=0, step=1, limit=4
    $region2: #{_locker_forward.3} parent=1 // loop_pre_header
      _
    $region3: #{_locker_forward.3} parent=1 // loop_header
      %s16 = sphi 0, %s20
      %p17 = scmp.ge.s32.totalorder %s16, 4
      %s23 = sphi 0, %s35
      %s24 = sphi 0, %s31
      %s25 = sphi 0, %s23
      %s26 = sphi 0, %s24
      %s27 = sphi 0, %s25
      %s28 = sphi 0, %s26
      %s42 = sphi 0, %s44
      %s45 = sphi 0, %s42
      %s46 = sphi 0, %s45
      %s62 = sphi 0, %s46
      %s68 = sphi 0, %s70
      %s71 = sphi 0, %s68
      %s72 = sphi 0, %s71
      %s88 = sphi 0, %s72
      %s94 = sphi 0, %s96
      %s97 = sphi 0, %s94
      %s98 = sphi 0, %s97
      %s114 = sphi 0, %s98
      %s124 = sphi 0, %s126
      %s127 = sphi 0, %s124
      %s128 = sphi 0, %s127
      %s144 = sphi 0, %s128
      %s154 = sphi 0, %s156
      %s157 = sphi 0, %s154
      %s158 = sphi 0, %s157
      %s174 = sphi 0, %s158
    $region4: #{_locker_forward.3} parent=1 // loop_header_branch
      %19 = sbr.rel (%p17) target = $region8
    $region5: #{_locker_forward.3} parent=1 // loop_body
      %s21 = ssub.s32 %s16, 1
      %s22 = ssub.s32 %s16, 2
      %s29 = sadd.s32 1, %s24
      %p30 = scmp.ge.s32.totalorder %s29, 1
      %s31 = scalar_select %p30, 0, %s29
      %s32 = sadd.s32 1, %s23
      %s33 = scalar_select %p30, %s32, %s23
      %p34 = scmp.ge.s32.totalorder %s33, 2
      %s35 = scalar_select %p34, 0, %s33
      %s36 = sadd.s32 %s23, 2
      %s37 = sadd.s32 %s35, 2
      %s38 = ssub.s32 %s24, %s31
      %s39 = ssub.s32 %s36, %s37
      %s40 = sor.u32 %s38, %s39
      %p41 = scmp.eq.s32.totalorder %s40, 0
      %s43 = sadd.s32 %s42, 1
      %s44 = scalar_select %p41, %s42, %s43
      %p47 = pneg %p41
      %p48 = scmp.eq.s32.totalorder %s16, 1
      %p49 = por %p47, %p48
      %p50 = scmp.ne.s32.totalorder %s42, %s45
      %p51 = scmp.eq.s32.totalorder %s16, 0
      %p52 = por %p50, %p51
      %p53 = scmp.ne.s32.totalorder %s42, %s45
      %p54 = scmp.eq.s32.totalorder %s21, 1
      %p55 = por %p53, %p54
      %p56 = scmp.ne.s32.totalorder %s45, %s46
      %p57 = scmp.eq.s32.totalorder %s21, 0
      %p58 = por %p56, %p57
      %p59 = scmp.ne.s32.totalorder %s45, %s46
      %p60 = scmp.eq.s32.totalorder %s22, 1
      %p61 = por %p59, %p60
      %p63 = scmp.ne.s32.totalorder %s46, %s62
      %p64 = scmp.eq.s32.totalorder %s22, 0
      %p65 = por %p63, %p64
      %s66 = ssub.s32 %s23, %s35
      %p67 = scmp.eq.s32.totalorder %s66, 0
      %s69 = sadd.s32 %s68, 1
      %s70 = scalar_select %p67, %s68, %s69
      %p73 = pneg %p67
      %p74 = scmp.eq.s32.totalorder %s16, 1
      %p75 = por %p73, %p74
      %p76 = scmp.ne.s32.totalorder %s68, %s71
      %p77 = scmp.eq.s32.totalorder %s16, 0
      %p78 = por %p76, %p77
      %p79 = scmp.ne.s32.totalorder %s68, %s71
      %p80 = scmp.eq.s32.totalorder %s21, 1
      %p81 = por %p79, %p80
      %p82 = scmp.ne.s32.totalorder %s71, %s72
      %p83 = scmp.eq.s32.totalorder %s21, 0
      %p84 = por %p82, %p83
      %p85 = scmp.ne.s32.totalorder %s71, %s72
      %p86 = scmp.eq.s32.totalorder %s22, 1
      %p87 = por %p85, %p86
      %p89 = scmp.ne.s32.totalorder %s72, %s88
      %p90 = scmp.eq.s32.totalorder %s22, 0
      %p91 = por %p89, %p90
      %s92 = ssub.s32 %s23, %s35
      %p93 = scmp.eq.s32.totalorder %s92, 0
      %s95 = sadd.s32 %s94, 1
      %s96 = scalar_select %p93, %s94, %s95
      %p99 = pneg %p93
      %p100 = scmp.eq.s32.totalorder %s16, 1
      %p101 = por %p99, %p100
      %p102 = scmp.ne.s32.totalorder %s94, %s97
      %p103 = scmp.eq.s32.totalorder %s16, 0
      %p104 = por %p102, %p103
      %p105 = scmp.ne.s32.totalorder %s94, %s97
      %p106 = scmp.eq.s32.totalorder %s21, 1
      %p107 = por %p105, %p106
      %p108 = scmp.ne.s32.totalorder %s97, %s98
      %p109 = scmp.eq.s32.totalorder %s21, 0
      %p110 = por %p108, %p109
      %p111 = scmp.ne.s32.totalorder %s97, %s98
      %p112 = scmp.eq.s32.totalorder %s22, 1
      %p113 = por %p111, %p112
      %p115 = scmp.ne.s32.totalorder %s98, %s114
      %p116 = scmp.eq.s32.totalorder %s22, 0
      %p117 = por %p115, %p116
      %s118 = sadd.s32 %s23, 2
      %s119 = sadd.s32 %s35, 2
      %s120 = ssub.s32 %s24, %s31
      %s121 = ssub.s32 %s118, %s119
      %s122 = sor.u32 %s120, %s121
      %p123 = scmp.eq.s32.totalorder %s122, 0
      %s125 = sadd.s32 %s124, 1
      %s126 = scalar_select %p123, %s124, %s125
      %p129 = pneg %p123
      %p130 = scmp.eq.s32.totalorder %s16, 1
      %p131 = por %p129, %p130
      %p132 = scmp.ne.s32.totalorder %s124, %s127
      %p133 = scmp.eq.s32.totalorder %s16, 0
      %p134 = por %p132, %p133
      %p135 = scmp.ne.s32.totalorder %s124, %s127
      %p136 = scmp.eq.s32.totalorder %s21, 1
      %p137 = por %p135, %p136
      %p138 = scmp.ne.s32.totalorder %s127, %s128
      %p139 = scmp.eq.s32.totalorder %s21, 0
      %p140 = por %p138, %p139
      %p141 = scmp.ne.s32.totalorder %s127, %s128
      %p142 = scmp.eq.s32.totalorder %s22, 1
      %p143 = por %p141, %p142
      %p145 = scmp.ne.s32.totalorder %s128, %s144
      %p146 = scmp.eq.s32.totalorder %s22, 0
      %p147 = por %p145, %p146
      %s148 = sadd.s32 %s23, 2
      %s149 = sadd.s32 %s35, 2
      %s150 = ssub.s32 %s24, %s31
      %s151 = ssub.s32 %s148, %s149
      %s152 = sor.u32 %s150, %s151
      %p153 = scmp.eq.s32.totalorder %s152, 0
      %s155 = sadd.s32 %s154, 1
      %s156 = scalar_select %p153, %s154, %s155
      %p159 = pneg %p153
      %p160 = scmp.eq.s32.totalorder %s16, 1
      %p161 = por %p159, %p160
      %p162 = scmp.ne.s32.totalorder %s154, %s157
      %p163 = scmp.eq.s32.totalorder %s16, 0
      %p164 = por %p162, %p163
      %p165 = scmp.ne.s32.totalorder %s154, %s157
      %p166 = scmp.eq.s32.totalorder %s21, 1
      %p167 = por %p165, %p166
      %p168 = scmp.ne.s32.totalorder %s157, %s158
      %p169 = scmp.eq.s32.totalorder %s21, 0
      %p170 = por %p168, %p169
      %p171 = scmp.ne.s32.totalorder %s157, %s158
      %p172 = scmp.eq.s32.totalorder %s22, 1
      %p173 = por %p171, %p172
      %p175 = scmp.ne.s32.totalorder %s158, %s174
      %p176 = scmp.eq.s32.totalorder %s22, 0
      %p177 = por %p175, %p176
      %p178 = scmp.le.s32.totalorder 1, %s16
      %p179 = scmp.lt.s32.totalorder %s16, 3
      %p180 = pnand %p178, %p179
      %p181 = pneg %p180
      // Predicated region
      $region9: #{_locker_forward.3} parent=5 // pred_check
        _
      $region10: #{_locker_forward.3} parent=5 // pred_check_branch
        %183 = sbr.rel (%p180) target = $region12
      $region11: #{_locker_forward.3} parent=5 // pred_region
        %s184 = ssub.s32 %s16, 1
      $region12: #{_locker_forward.3} parent=5 // pred_fallthru
        _
      %p185 = scmp.lt.s32.totalorder %s16, 2
      // Predicated region
      $region13: #{_locker_forward.3} parent=5 // pred_check
        %p186 = pneg %p185
      $region14: #{_locker_forward.3} parent=5 // pred_check_branch
        %188 = sbr.rel (%p186) target = $region16
      $region15: #{_locker_forward.3} parent=5 // pred_region
        // Predicated region
        $region17: #{_locker_forward.3} parent=15 // pred_check
          %p189 = pneg %p52
        $region18: #{_locker_forward.3} parent=15 // pred_check_branch
          %191 = sbr.rel (%p189) target = $region20
        $region19: #{_locker_forward.3} parent=15 // pred_region
          %s192 = sand.u32 %s42, 1
          %s193 = sand.u32 %s42, 1
          %s194 = smul.addr %s193, 32
          %s195 = scalar_lea.vmem [#allocation2], %s194
          %s196 = sadd.s32 %s23, 2
          %s197 = smul.u32 2, %s24
          %s198 = smul.addr %s196, 2
          %s199 = smul.addr %s197, 8
          %s200 = sadd.s32 %s198, %s199
          %s201 = smul.addr %s200, 8
          %s202 = scalar_lea.vmem %s0, %s201
          // Predicated region
          $region21: #{_locker_forward.3} parent=19 // pred_check
            _
          $region22: #{_locker_forward.3} parent=19 // pred_check_branch
            %204 = sbr.rel (0) target = $region24
          $region23: #{_locker_forward.3} parent=19 // pred_region
            // Predicated region
            $region25: #{_locker_forward.3} parent=23 // pred_check
              _
            $region26: #{_locker_forward.3} parent=23 // pred_check_branch
              %206 = sbr.rel (0) target = $region28
            $region27: #{_locker_forward.3} parent=23 // pred_region
              // Predicated region
              $region40: #{_locker_forward.3} parent=27 // pred_check
                _
              $region41: #{_locker_forward.3} parent=27 // pred_check_branch
                %228 = sbr.rel (0) target = $region43
              $region42: #{_locker_forward.3} parent=27 // pred_region
                loop: start=0, step=1, limit=1
                $region44: #{_locker_forward.3} parent=42 // loop_pre_header
                  _
                $region45: #{_locker_forward.3} parent=42 // loop_header
                  %s230 = sphi 0, %s234
                  %p231 = scmp.ge.s32.totalorder %s230, 1
                  %s235 = sphi %s202, %s202
                  %s236 = sphi %s195, %s195
                $region46: #{_locker_forward.3} parent=42 // loop_header_branch
                  %233 = sbr.rel (%p231) target = $region50
                $region47: #{_locker_forward.3} parent=42 // loop_body
                  %v237 = vld [vmem:[%s235] sm:$0xff]
                  %238 = vst [vmem:[%s236] sm:$0xff] %v237
                  %v239 = vld [vmem:[%s235 + $0x8] sm:$0xff]
                  %240 = vst [vmem:[%s236 + $0x8] sm:$0xff] %v239
                  %v241 = vld [vmem:[%s235 + $0x40] sm:$0xff]
                  %242 = vst [vmem:[%s236 + $0x10] sm:$0xff] %v241
                  %v243 = vld [vmem:[%s235 + $0x48] sm:$0xff]
                  %244 = vst [vmem:[%s236 + $0x18] sm:$0xff] %v243
                $region48: #{_locker_forward.3} parent=42 // loop_footer
                  %s234 = sadd.s32 1, %s230
                $region49: #{_locker_forward.3} parent=42 // loop_footer_branch
                  %229 = sbr.rel target = $region45
                $region50: #{_locker_forward.3} parent=42 // loop_exit
                  _
              $region43: #{_locker_forward.3} parent=27 // pred_fallthru
                _
              // Predicated region
              $region51: #{_locker_forward.3} parent=27 // pred_check
                _
              $region52: #{_locker_forward.3} parent=27 // pred_check_branch
                %246 = sbr.rel target = $region54
              $region53: #{_locker_forward.3} parent=27 // pred_region
                _
              $region54: #{_locker_forward.3} parent=27 // pred_fallthru
                _
            $region28: #{_locker_forward.3} parent=23 // pred_fallthru
              _
            // Predicated region
            $region29: #{_locker_forward.3} parent=23 // pred_check
              _
            $region30: #{_locker_forward.3} parent=23 // pred_check_branch
              %208 = sbr.rel target = $region32
            $region31: #{_locker_forward.3} parent=23 // pred_region
              %s210 = ssub.s32 256, 1
              loop: start=0, step=1, limit=1
              $region33: #{_locker_forward.3} parent=31 // loop_pre_header
                _
              $region34: #{_locker_forward.3} parent=31 // loop_header
                %s212 = sphi 0, %s216
                %p213 = scmp.ge.s32.totalorder %s212, 1
                %s217 = sphi %s202, %s202
                %s218 = sphi %s195, %s195
              $region35: #{_locker_forward.3} parent=31 // loop_header_branch
                %215 = sbr.rel (%p213) target = $region39
              $region36: #{_locker_forward.3} parent=31 // loop_body
                %v219 = vld [vmem:[%s217] sm:%s210]
                %220 = vst [vmem:[%s218] sm:%s210] %v219
                %v221 = vld [vmem:[%s217 + $0x8] sm:%s210]
                %222 = vst [vmem:[%s218 + $0x8] sm:%s210] %v221
                %v223 = vld [vmem:[%s217 + $0x40] sm:%s210]
                %224 = vst [vmem:[%s218 + $0x10] sm:%s210] %v223
                %v225 = vld [vmem:[%s217 + $0x48] sm:%s210]
                %226 = vst [vmem:[%s218 + $0x18] sm:%s210] %v225
              $region37: #{_locker_forward.3} parent=31 // loop_footer
                %s216 = sadd.s32 1, %s212
              $region38: #{_locker_forward.3} parent=31 // loop_footer_branch
                %211 = sbr.rel target = $region34
              $region39: #{_locker_forward.3} parent=31 // loop_exit
                _
            $region32: #{_locker_forward.3} parent=23 // pred_fallthru
              _
          $region24: #{_locker_forward.3} parent=19 // pred_fallthru
            _
          %247 = vnop
        $region20: #{_locker_forward.3} parent=15 // pred_fallthru
          _
        // Predicated region
        $region55: #{_locker_forward.3} parent=15 // pred_check
          %p248 = pneg %p78
        $region56: #{_locker_forward.3} parent=15 // pred_check_branch
          %250 = sbr.rel (%p248) target = $region58
        $region57: #{_locker_forward.3} parent=15 // pred_region
          %p251 = scmp.lt.s32.totalorder %s23, 1
          %s252 = scalar_select %p251, %s23, 1
          %s253 = smul.addr %s252, 12
          %s254 = smul.addr %s253, 8
          %s255 = scalar_lea.vmem %s1, %s254
        $region58: #{_locker_forward.3} parent=15 // pred_fallthru
          _
        // Predicated region
        $region59: #{_locker_forward.3} parent=15 // pred_check
          %p256 = pneg %p104
        $region60: #{_locker_forward.3} parent=15 // pred_check_branch
          %258 = sbr.rel (%p256) target = $region62
        $region61: #{_locker_forward.3} parent=15 // pred_region
          %p259 = scmp.lt.s32.totalorder %s23, 1
          %s260 = scalar_select %p259, %s23, 1
          %s261 = scalar_lea.vmem %s2, %s260
        $region62: #{_locker_forward.3} parent=15 // pred_fallthru
          _
        // Predicated region
        $region63: #{_locker_forward.3} parent=15 // pred_check
          %p262 = pneg %p134
        $region64: #{_locker_forward.3} parent=15 // pred_check_branch
          %264 = sbr.rel (%p262) target = $region66
        $region65: #{_locker_forward.3} parent=15 // pred_region
          #allocation8 [shape = 'u32[6]{0}', space=smem, size = 0x18, scoped, tag = 'DMA stride descriptor']
          %s265 = sand.u32 %s124, 1
          %s266 = scalar_lea.sflag [#allocation4], %s265
          %s267 = sand.u32 %s124, 1
          %s268 = smul.addr %s267, 32
          %s269 = scalar_lea.vmem [#allocation3], %s268
          %s270 = sadd.s32 %s23, 2
          %s271 = smul.u32 2, %s24
          %s273 = ssub.s32 512, 512
          %274 = vsyncadd %s266, %s273
          %s275 = smul.addr %s270, 2
          %s276 = smul.addr %s271, 8
          %s277 = sadd.s32 %s275, %s276
          %s278 = smul.addr %s277, 128
          %s279 = scalar_lea.hbm %s3, %s278
          %s281 = sshll.u32 1, 14
          %s282 = sxor.u32 4294967295, %s281
          %s284 = sld [smem:[#allocation0]]
          %s285 = sadd.s32 2, %s284
          %s287 = sshll.u32 7, 26
          %s288 = sxor.u32 4294967295, %s287
          %s289 = sand.u32 0, %s288
          %s290 = sshll.u32 %s285, 26
          %s291 = sor.u32 %s289, %s290
          %s292 = sshll.u32 %s269, 4
          %s293 = int_to_ptr.vmem [resolvable:$true] %s292
          %299 = sst [smem:[#allocation8]] 1024
          %s300 = scalar_lea.smem [#allocation8], 1
          %301 = sst [smem:[%s300]] 256
          %s302 = scalar_lea.smem [#allocation8], 2
          %303 = sst [smem:[%s302]] 2
          %s304 = scalar_lea.smem [#allocation8], 3
          %305 = sst [smem:[%s304]] 128
          %s306 = scalar_lea.smem [#allocation8], 4
          %307 = sst [smem:[%s306]] 128
          %s308 = scalar_lea.smem [#allocation8], 5
          %309 = sst [smem:[%s308]] 8
          %311 = dma.general %s279, 512, %s293, %s266, 131072, [#allocation8], %s291, 0
        $region66: #{_locker_forward.3} parent=15 // pred_fallthru
          _
      $region16: #{_locker_forward.3} parent=5 // pred_fallthru
        _
      %p312 = scmp.le.s32.totalorder 1, %s16
      %p313 = scmp.lt.s32.totalorder %s16, 3
      %p314 = pnand %p312, %p313
      %p315 = pneg %p314
      // Predicated region
      $region67: #{_locker_forward.3} parent=5 // pred_check
        _
      $region68: #{_locker_forward.3} parent=5 // pred_check_branch
        %317 = sbr.rel (%p314) target = $region70
      $region69: #{_locker_forward.3} parent=5 // pred_region
        %s318 = ssub.s32 %s16, 1
        %s319 = sand.u32 %s45, 1
        %s320 = sand.u32 %s45, 1
        %s321 = smul.addr %s320, 32
        %s322 = scalar_lea.vmem [#allocation2], %s321
        // Predicated region
        $region71: #{_locker_forward.3} parent=69 // pred_check
          %p323 = pneg %p58
        $region72: #{_locker_forward.3} parent=69 // pred_check_branch
          %325 = sbr.rel (%p323) target = $region74
        $region73: #{_locker_forward.3} parent=69 // pred_region
          _
        $region74: #{_locker_forward.3} parent=69 // pred_fallthru
          _
        %s326 = sand.u32 %s127, 1
        %s327 = scalar_lea.sflag [#allocation4], %s326
        %s328 = sand.u32 %s127, 1
        %s329 = smul.addr %s328, 32
        %s330 = scalar_lea.vmem [#allocation3], %s329
        // Predicated region
        $region75: #{_locker_forward.3} parent=69 // pred_check
          %p331 = pneg %p140
        $region76: #{_locker_forward.3} parent=69 // pred_check_branch
          %333 = sbr.rel (%p331) target = $region78
        $region77: #{_locker_forward.3} parent=69 // pred_region
          %334 = dma.done %s327, 512
        $region78: #{_locker_forward.3} parent=69 // pred_fallthru
          _
        %s335 = sand.u32 %s45, 1
        %s336 = sand.u32 %s45, 1
        %s337 = smul.addr %s336, 32
        %s338 = scalar_lea.vmem [#allocation2], %s337
        %p339 = pneg %p58
        %p340 = pneg %p55
        %p341 = scmp.lt.s32.totalorder %s25, 1
        %s342 = scalar_select %p341, %s25, 1
        %s343 = smul.addr %s342, 12
        %s344 = smul.addr %s343, 8
        %s345 = scalar_lea.vmem %s1, %s344
        %p346 = pneg %p84
        %p347 = pneg %p81
        %p348 = scmp.lt.s32.totalorder %s25, 1
        %s349 = scalar_select %p348, %s25, 1
        %s350 = scalar_lea.vmem %s2, %s349
        %p351 = pneg %p110
        %p352 = pneg %p107
        %s353 = sand.u32 %s127, 1
        %s354 = scalar_lea.sflag [#allocation4], %s353
        %s355 = sand.u32 %s127, 1
        %s356 = smul.addr %s355, 32
        %s357 = scalar_lea.vmem [#allocation3], %s356
        %p358 = pneg %p140
        %p359 = pneg %p137
        %p360 = pneg %p170
        %p361 = pneg %p167
        %s362 = sand.u32 %s157, 1
        %s363 = scalar_lea.sflag [#allocation5], %s362
        %s364 = sand.u32 %s157, 1
        %s365 = smul.addr %s364, 32
        %s366 = scalar_lea.vmem [#allocation6], %s365
        %s367 = sadd.s32 %s25, 2
        %s368 = smul.u32 2, %s26
        %p369 = scmp.lt.s32.totalorder %s25, 1
        %s370 = scalar_select %p369, %s25, 1
        %s371 = smul.addr %s370, 12
        %s372 = smul.addr %s371, 8
        %s373 = scalar_lea.vmem %s1, %s372
        %p374 = scmp.lt.s32.totalorder %s25, 1
        %s375 = scalar_select %p374, %s25, 1
        %s376 = scalar_lea.vmem %s2, %s375
        %s377 = sadd.s32 %s25, 2
        %s378 = smul.u32 2, %s26
        %s379 = sadd.s32 %s25, 2
        %s380 = smul.u32 2, %s26
        %v381 = vld [vmem:[%s376] sm:$0x1]
        %v382 = vlaneseq
        %v383 = vshrl.u32 %v382, 7
        %v384 = vadd.s32 %v383, 8
        %v385 = vld [vmem:[%s322] sm:$0xff]
        %v386 = vld [vmem:[%s322 + $0x8] sm:$0xff]
        %v387 = vrot.slane %v385, 7
        %v388 = vrot.slane %v386, 7
        %vm389 = vcmp.lt.s32.totalorder %v383, 1
        %v390 = vsel %vm389, %v387, %v388
        %v391 = vsel %vm389, %v388, %v387
        %vm392 = vcmp.ge.s32.totalorder %v383, 1
        %vm393 = vcmp.ge.s32.totalorder %v384, 1
        %v394 = vsel %vm392, %v391, 0.0
        %v395 = vsel %vm393, %v390, 0.0
        %v396 = vld [vmem:[%s373] sm:$0xff]
        %v397 = vld [vmem:[%s373 + $0x8] sm:$0xff]
        %v398 = vld [vmem:[%s373 + $0x10] sm:$0xff]
        %v399 = vld [vmem:[%s373 + $0x18] sm:$0xff]
        %s400 = scalar_lea.vmem %s373, 32
        %v401 = vld [vmem:[%s400] sm:$0xff]
        %v402 = vld [vmem:[%s400 + $0x8] sm:$0xff]
        %v403 = vld [vmem:[%s400 + $0x10] sm:$0xff]
        %v404 = vld [vmem:[%s400 + $0x18] sm:$0xff]
        %vm405 = vcmask 261120
        %v407 = vsel %vm405, %v385, 0
        %v410 = vsel %vm405, %v386, 0
        %412 = vmatprep.subr.mxu0 0.0
        %413 = vmatpush1.msra.mxu0 0.0
        %414 = vmatprep.subr.mxu0 0.0
        %415 = vmatpush1.msra.mxu0 0.0
        %416 = vmatprep.subr.mxu0 0.0
        %417 = vmatpush1.msra.mxu0 0.0
        %418 = vmatprep.subr.mxu0 0.0
        %419 = vmatpush1.msra.mxu0 0.0
        %420 = vmatprep.subr.mxu0 0.0
        %421 = vmatpush1.msra.mxu0 0.0
        %422 = vmatprep.subr.mxu0 0.0
        %423 = vmatpush1.msra.mxu0 0.0
        %424 = vmatprep.subr.mxu0 0.0
        %425 = vmatpush1.msra.mxu0 0.0
        %426 = vmatprep.subr.mxu0 0.0
        %427 = vmatpush1.msra.mxu0 0.0
        %428 = vmatprep.subr.mxu0 0.0
        %429 = vmatpush1.msra.mxu0 0.0
        %430 = vmatprep.subr.mxu0 0.0
        %431 = vmatpush1.msra.mxu0 0.0
        %432 = vmatprep.subr.mxu0 0.0
        %433 = vmatpush1.msra.mxu0 0.0
        %434 = vmatprep.subr.mxu0 0.0
        %435 = vmatpush1.msra.mxu0 0.0
        %436 = vmatprep.subr.mxu0 0.0
        %437 = vmatpush1.msra.mxu0 %v404
        %438 = vmatprep.subr.mxu0 0.0
        %439 = vmatpush1.msra.mxu0 %v403
        %440 = vmatprep.subr.mxu0 0.0
        %441 = vmatpush1.msra.mxu0 %v402
        %442 = vmatprep.subr.mxu0 0.0
        %443 = vmatpush1.msra.mxu0 %v401
        %444 = vmatprep.subr.mxu0 0.0
        %445 = vmatpush2.msra.mxu0 0.0
        %446 = vmatprep.subr.mxu0 0.0
        %447 = vmatpush2.msra.mxu0 0.0
        %448 = vmatprep.subr.mxu0 0.0
        %449 = vmatpush2.msra.mxu0 0.0
        %450 = vmatprep.subr.mxu0 0.0
        %451 = vmatpush2.msra.mxu0 0.0
        %452 = vmatprep.subr.mxu0 0.0
        %453 = vmatpush2.msra.mxu0 0.0
        %454 = vmatprep.subr.mxu0 0.0
        %455 = vmatpush2.msra.mxu0 0.0
        %456 = vmatprep.subr.mxu0 0.0
        %457 = vmatpush2.msra.mxu0 0.0
        %458 = vmatprep.subr.mxu0 0.0
        %459 = vmatpush2.msra.mxu0 0.0
        %460 = vmatprep.subr.mxu0 0.0
        %461 = vmatpush2.msra.mxu0 0.0
        %462 = vmatprep.subr.mxu0 0.0
        %463 = vmatpush2.msra.mxu0 0.0
        %464 = vmatprep.subr.mxu0 0.0
        %465 = vmatpush2.msra.mxu0 0.0
        %466 = vmatprep.subr.mxu0 0.0
        %467 = vmatpush2.msra.mxu0 0.0
        %468 = vmatprep.subr.mxu0 0.0
        %469 = vmatpush2.msra.mxu0 0.0
        %470 = vmatprep.subr.mxu0 0.0
        %471 = vmatpush2.msra.mxu0 0.0
        %472 = vmatprep.subr.mxu0 0.0
        %473 = vmatpush2.msra.mxu0 0.0
        %474 = vmatprep.subr.mxu0 0.0
        %475 = vmatpush2.msra.mxu0 0.0
        %476 = vmatprep.mubr.f32.mxu0 0.0
        %477 = vmatmul.mubr.f32.gmra.mxu0 %v407
        %v478 = vpop.f32.mrf.mxu0
        %v479 = vadd.f32 0.0, %v478
        %v480 = vpop.f32.mrf.mxu0
        %481 = vmatprep.mubr.f32.mxu0 0.0
        %482 = vmatmul.mubr.f32.gmra.mxu0 %v410
        %v483 = vpop.f32.mrf.mxu0
        %v484 = vadd.f32 0.0, %v483
        %v485 = vpop.f32.mrf.mxu0
        %486 = vdwg.mxu0
        %v488 = vsel %vm405, %v394, 0
        %v491 = vsel %vm405, %v395, 0
        %493 = vmatprep.subr.mxu0 0.0
        %494 = vmatpush1.msra.mxu0 0.0
        %495 = vmatprep.subr.mxu0 0.0
        %496 = vmatpush1.msra.mxu0 0.0
        %497 = vmatprep.subr.mxu0 0.0
        %498 = vmatpush1.msra.mxu0 0.0
        %499 = vmatprep.subr.mxu0 0.0
        %500 = vmatpush1.msra.mxu0 0.0
        %501 = vmatprep.subr.mxu0 0.0
        %502 = vmatpush1.msra.mxu0 0.0
        %503 = vmatprep.subr.mxu0 0.0
        %504 = vmatpush1.msra.mxu0 0.0
        %505 = vmatprep.subr.mxu0 0.0
        %506 = vmatpush1.msra.mxu0 0.0
        %507 = vmatprep.subr.mxu0 0.0
        %508 = vmatpush1.msra.mxu0 0.0
        %509 = vmatprep.subr.mxu0 0.0
        %510 = vmatpush1.msra.mxu0 0.0
        %511 = vmatprep.subr.mxu0 0.0
        %512 = vmatpush1.msra.mxu0 0.0
        %513 = vmatprep.subr.mxu0 0.0
        %514 = vmatpush1.msra.mxu0 0.0
        %515 = vmatprep.subr.mxu0 0.0
        %516 = vmatpush1.msra.mxu0 0.0
        %517 = vmatprep.subr.mxu0 0.0
        %518 = vmatpush1.msra.mxu0 %v399
        %519 = vmatprep.subr.mxu0 0.0
        %520 = vmatpush1.msra.mxu0 %v398
        %521 = vmatprep.subr.mxu0 0.0
        %522 = vmatpush1.msra.mxu0 %v397
        %523 = vmatprep.subr.mxu0 0.0
        %524 = vmatpush1.msra.mxu0 %v396
        %525 = vmatprep.subr.mxu0 0.0
        %526 = vmatpush2.msra.mxu0 0.0
        %527 = vmatprep.subr.mxu0 0.0
        %528 = vmatpush2.msra.mxu0 0.0
        %529 = vmatprep.subr.mxu0 0.0
        %530 = vmatpush2.msra.mxu0 0.0
        %531 = vmatprep.subr.mxu0 0.0
        %532 = vmatpush2.msra.mxu0 0.0
        %533 = vmatprep.subr.mxu0 0.0
        %534 = vmatpush2.msra.mxu0 0.0
        %535 = vmatprep.subr.mxu0 0.0
        %536 = vmatpush2.msra.mxu0 0.0
        %537 = vmatprep.subr.mxu0 0.0
        %538 = vmatpush2.msra.mxu0 0.0
        %539 = vmatprep.subr.mxu0 0.0
        %540 = vmatpush2.msra.mxu0 0.0
        %541 = vmatprep.subr.mxu0 0.0
        %542 = vmatpush2.msra.mxu0 0.0
        %543 = vmatprep.subr.mxu0 0.0
        %544 = vmatpush2.msra.mxu0 0.0
        %545 = vmatprep.subr.mxu0 0.0
        %546 = vmatpush2.msra.mxu0 0.0
        %547 = vmatprep.subr.mxu0 0.0
        %548 = vmatpush2.msra.mxu0 0.0
        %549 = vmatprep.subr.mxu0 0.0
        %550 = vmatpush2.msra.mxu0 0.0
        %551 = vmatprep.subr.mxu0 0.0
        %552 = vmatpush2.msra.mxu0 0.0
        %553 = vmatprep.subr.mxu0 0.0
        %554 = vmatpush2.msra.mxu0 0.0
        %555 = vmatprep.subr.mxu0 0.0
        %556 = vmatpush2.msra.mxu0 0.0
        %557 = vmatprep.mubr.f32.mxu0 0.0
        %558 = vmatmul.mubr.f32.gmra.mxu0 %v488
        %v559 = vpop.f32.mrf.mxu0
        %v560 = vadd.f32 %v479, %v559
        %v561 = vpop.f32.mrf.mxu0
        %562 = vmatprep.mubr.f32.mxu0 0.0
        %563 = vmatmul.mubr.f32.gmra.mxu0 %v491
        %v564 = vpop.f32.mrf.mxu0
        %v565 = vadd.f32 %v484, %v564
        %v566 = vpop.f32.mrf.mxu0
        %567 = vdwg.mxu0
        %v568 = vrot.slane %v385, 1
        %v569 = vrot.slane %v386, 1
        %vm570 = vcmp.lt.s32.totalorder %v383, 7
        %v571 = vsel %vm570, %v568, %v569
        %v572 = vsel %vm570, %v569, %v568
        %vm573 = vcmp.lt.s32.totalorder %v383, 15
        %vm574 = vcmp.lt.s32.totalorder %v384, 15
        %v575 = vsel %vm573, %v571, 0.0
        %v576 = vsel %vm574, %v572, 0.0
        %s577 = scalar_lea.vmem %s373, 64
        %v578 = vld [vmem:[%s577] sm:$0xff]
        %v579 = vld [vmem:[%s577 + $0x8] sm:$0xff]
        %v580 = vld [vmem:[%s577 + $0x10] sm:$0xff]
        %v581 = vld [vmem:[%s577 + $0x18] sm:$0xff]
        %v583 = vsel %vm405, %v575, 0
        %v586 = vsel %vm405, %v576, 0
        %588 = vmatprep.subr.mxu0 0.0
        %589 = vmatpush1.msra.mxu0 0.0
        %590 = vmatprep.subr.mxu0 0.0
        %591 = vmatpush1.msra.mxu0 0.0
        %592 = vmatprep.subr.mxu0 0.0
        %593 = vmatpush1.msra.mxu0 0.0
        %594 = vmatprep.subr.mxu0 0.0
        %595 = vmatpush1.msra.mxu0 0.0
        %596 = vmatprep.subr.mxu0 0.0
        %597 = vmatpush1.msra.mxu0 0.0
        %598 = vmatprep.subr.mxu0 0.0
        %599 = vmatpush1.msra.mxu0 0.0
        %600 = vmatprep.subr.mxu0 0.0
        %601 = vmatpush1.msra.mxu0 0.0
        %602 = vmatprep.subr.mxu0 0.0
        %603 = vmatpush1.msra.mxu0 0.0
        %604 = vmatprep.subr.mxu0 0.0
        %605 = vmatpush1.msra.mxu0 0.0
        %606 = vmatprep.subr.mxu0 0.0
        %607 = vmatpush1.msra.mxu0 0.0
        %608 = vmatprep.subr.mxu0 0.0
        %609 = vmatpush1.msra.mxu0 0.0
        %610 = vmatprep.subr.mxu0 0.0
        %611 = vmatpush1.msra.mxu0 0.0
        %612 = vmatprep.subr.mxu0 0.0
        %613 = vmatpush1.msra.mxu0 %v581
        %614 = vmatprep.subr.mxu0 0.0
        %615 = vmatpush1.msra.mxu0 %v580
        %616 = vmatprep.subr.mxu0 0.0
        %617 = vmatpush1.msra.mxu0 %v579
        %618 = vmatprep.subr.mxu0 0.0
        %619 = vmatpush1.msra.mxu0 %v578
        %620 = vmatprep.subr.mxu0 0.0
        %621 = vmatpush2.msra.mxu0 0.0
        %622 = vmatprep.subr.mxu0 0.0
        %623 = vmatpush2.msra.mxu0 0.0
        %624 = vmatprep.subr.mxu0 0.0
        %625 = vmatpush2.msra.mxu0 0.0
        %626 = vmatprep.subr.mxu0 0.0
        %627 = vmatpush2.msra.mxu0 0.0
        %628 = vmatprep.subr.mxu0 0.0
        %629 = vmatpush2.msra.mxu0 0.0
        %630 = vmatprep.subr.mxu0 0.0
        %631 = vmatpush2.msra.mxu0 0.0
        %632 = vmatprep.subr.mxu0 0.0
        %633 = vmatpush2.msra.mxu0 0.0
        %634 = vmatprep.subr.mxu0 0.0
        %635 = vmatpush2.msra.mxu0 0.0
        %636 = vmatprep.subr.mxu0 0.0
        %637 = vmatpush2.msra.mxu0 0.0
        %638 = vmatprep.subr.mxu0 0.0
        %639 = vmatpush2.msra.mxu0 0.0
        %640 = vmatprep.subr.mxu0 0.0
        %641 = vmatpush2.msra.mxu0 0.0
        %642 = vmatprep.subr.mxu0 0.0
        %643 = vmatpush2.msra.mxu0 0.0
        %644 = vmatprep.subr.mxu0 0.0
        %645 = vmatpush2.msra.mxu0 0.0
        %646 = vmatprep.subr.mxu0 0.0
        %647 = vmatpush2.msra.mxu0 0.0
        %648 = vmatprep.subr.mxu0 0.0
        %649 = vmatpush2.msra.mxu0 0.0
        %650 = vmatprep.subr.mxu0 0.0
        %651 = vmatpush2.msra.mxu0 0.0
        %652 = vmatprep.mubr.f32.mxu0 0.0
        %653 = vmatmul.mubr.f32.gmra.mxu0 %v583
        %v654 = vpop.f32.mrf.mxu0
        %v655 = vadd.f32 0.0, %v654
        %v656 = vpop.f32.mrf.mxu0
        %657 = vmatprep.mubr.f32.mxu0 0.0
        %658 = vmatmul.mubr.f32.gmra.mxu0 %v586
        %v659 = vpop.f32.mrf.mxu0
        %v660 = vadd.f32 0.0, %v659
        %v661 = vpop.f32.mrf.mxu0
        %662 = vdwg.mxu0
        %v663 = vadd.f32 %v560, %v655
        %v664 = vadd.f32 %v565, %v660
        %v666 = vlaneseq
        %v667 = vshrl.u32 %v666, 7
        %v668 = vsub.s32 0, %v667
        %v669 = vrot.slane %v381, %v668
        %v671 = vadd.f32 %v663, %v669
        %v672 = vadd.f32 %v664, %v669
        %v673 = vmax.f32 %v671, 0.0
        %v674 = vmax.f32 %v672, 0.0
        %675 = vst.msk [vmem:[%s366] sm:$0xff] %vm405, %v673
        %676 = vst.msk [vmem:[%s366 + $0x8] sm:$0xff] %vm405, %v674
        %s677 = scalar_lea.vmem %s322, 16 [#allocation2]
        %v678 = vld [vmem:[%s677] sm:$0xff]
        %v679 = vld [vmem:[%s677 + $0x8] sm:$0xff]
        %v680 = vrot.slane %v678, 7
        %v681 = vrot.slane %v679, 7
        %v682 = vsel %vm389, %v680, %v681
        %v683 = vsel %vm389, %v681, %v680
        %v684 = vsel %vm392, %v683, 0.0
        %v685 = vsel %vm393, %v682, 0.0
        %v686 = vld [vmem:[%s373] sm:$0xff]
        %v687 = vld [vmem:[%s373 + $0x8] sm:$0xff]
        %v688 = vld [vmem:[%s373 + $0x10] sm:$0xff]
        %v689 = vld [vmem:[%s373 + $0x18] sm:$0xff]
        %v690 = vld [vmem:[%s400] sm:$0xff]
        %v691 = vld [vmem:[%s400 + $0x8] sm:$0xff]
        %v692 = vld [vmem:[%s400 + $0x10] sm:$0xff]
        %v693 = vld [vmem:[%s400 + $0x18] sm:$0xff]
        %v695 = vsel %vm405, %v678, 0
        %v698 = vsel %vm405, %v679, 0
        %700 = vmatprep.subr.mxu0 0.0
        %701 = vmatpush1.msra.mxu0 0.0
        %702 = vmatprep.subr.mxu0 0.0
        %703 = vmatpush1.msra.mxu0 0.0
        %704 = vmatprep.subr.mxu0 0.0
        %705 = vmatpush1.msra.mxu0 0.0
        %706 = vmatprep.subr.mxu0 0.0
        %707 = vmatpush1.msra.mxu0 0.0
        %708 = vmatprep.subr.mxu0 0.0
        %709 = vmatpush1.msra.mxu0 0.0
        %710 = vmatprep.subr.mxu0 0.0
        %711 = vmatpush1.msra.mxu0 0.0
        %712 = vmatprep.subr.mxu0 0.0
        %713 = vmatpush1.msra.mxu0 0.0
        %714 = vmatprep.subr.mxu0 0.0
        %715 = vmatpush1.msra.mxu0 0.0
        %716 = vmatprep.subr.mxu0 0.0
        %717 = vmatpush1.msra.mxu0 0.0
        %718 = vmatprep.subr.mxu0 0.0
        %719 = vmatpush1.msra.mxu0 0.0
        %720 = vmatprep.subr.mxu0 0.0
        %721 = vmatpush1.msra.mxu0 0.0
        %722 = vmatprep.subr.mxu0 0.0
        %723 = vmatpush1.msra.mxu0 0.0
        %724 = vmatprep.subr.mxu0 0.0
        %725 = vmatpush1.msra.mxu0 %v693
        %726 = vmatprep.subr.mxu0 0.0
        %727 = vmatpush1.msra.mxu0 %v692
        %728 = vmatprep.subr.mxu0 0.0
        %729 = vmatpush1.msra.mxu0 %v691
        %730 = vmatprep.subr.mxu0 0.0
        %731 = vmatpush1.msra.mxu0 %v690
        %732 = vmatprep.subr.mxu0 0.0
        %733 = vmatpush2.msra.mxu0 0.0
        %734 = vmatprep.subr.mxu0 0.0
        %735 = vmatpush2.msra.mxu0 0.0
        %736 = vmatprep.subr.mxu0 0.0
        %737 = vmatpush2.msra.mxu0 0.0
        %738 = vmatprep.subr.mxu0 0.0
        %739 = vmatpush2.msra.mxu0 0.0
        %740 = vmatprep.subr.mxu0 0.0
        %741 = vmatpush2.msra.mxu0 0.0
        %742 = vmatprep.subr.mxu0 0.0
        %743 = vmatpush2.msra.mxu0 0.0
        %744 = vmatprep.subr.mxu0 0.0
        %745 = vmatpush2.msra.mxu0 0.0
        %746 = vmatprep.subr.mxu0 0.0
        %747 = vmatpush2.msra.mxu0 0.0
        %748 = vmatprep.subr.mxu0 0.0
        %749 = vmatpush2.msra.mxu0 0.0
        %750 = vmatprep.subr.mxu0 0.0
        %751 = vmatpush2.msra.mxu0 0.0
        %752 = vmatprep.subr.mxu0 0.0
        %753 = vmatpush2.msra.mxu0 0.0
        %754 = vmatprep.subr.mxu0 0.0
        %755 = vmatpush2.msra.mxu0 0.0
        %756 = vmatprep.subr.mxu0 0.0
        %757 = vmatpush2.msra.mxu0 0.0
        %758 = vmatprep.subr.mxu0 0.0
        %759 = vmatpush2.msra.mxu0 0.0
        %760 = vmatprep.subr.mxu0 0.0
        %761 = vmatpush2.msra.mxu0 0.0
        %762 = vmatprep.subr.mxu0 0.0
        %763 = vmatpush2.msra.mxu0 0.0
        %764 = vmatprep.mubr.f32.mxu0 0.0
        %765 = vmatmul.mubr.f32.gmra.mxu0 %v695
        %v766 = vpop.f32.mrf.mxu0
        %v767 = vadd.f32 0.0, %v766
        %v768 = vpop.f32.mrf.mxu0
        %769 = vmatprep.mubr.f32.mxu0 0.0
        %770 = vmatmul.mubr.f32.gmra.mxu0 %v698
        %v771 = vpop.f32.mrf.mxu0
        %v772 = vadd.f32 0.0, %v771
        %v773 = vpop.f32.mrf.mxu0
        %774 = vdwg.mxu0
        %v776 = vsel %vm405, %v684, 0
        %v779 = vsel %vm405, %v685, 0
        %781 = vmatprep.subr.mxu0 0.0
        %782 = vmatpush1.msra.mxu0 0.0
        %783 = vmatprep.subr.mxu0 0.0
        %784 = vmatpush1.msra.mxu0 0.0
        %785 = vmatprep.subr.mxu0 0.0
        %786 = vmatpush1.msra.mxu0 0.0
        %787 = vmatprep.subr.mxu0 0.0
        %788 = vmatpush1.msra.mxu0 0.0
        %789 = vmatprep.subr.mxu0 0.0
        %790 = vmatpush1.msra.mxu0 0.0
        %791 = vmatprep.subr.mxu0 0.0
        %792 = vmatpush1.msra.mxu0 0.0
        %793 = vmatprep.subr.mxu0 0.0
        %794 = vmatpush1.msra.mxu0 0.0
        %795 = vmatprep.subr.mxu0 0.0
        %796 = vmatpush1.msra.mxu0 0.0
        %797 = vmatprep.subr.mxu0 0.0
        %798 = vmatpush1.msra.mxu0 0.0
        %799 = vmatprep.subr.mxu0 0.0
        %800 = vmatpush1.msra.mxu0 0.0
        %801 = vmatprep.subr.mxu0 0.0
        %802 = vmatpush1.msra.mxu0 0.0
        %803 = vmatprep.subr.mxu0 0.0
        %804 = vmatpush1.msra.mxu0 0.0
        %805 = vmatprep.subr.mxu0 0.0
        %806 = vmatpush1.msra.mxu0 %v689
        %807 = vmatprep.subr.mxu0 0.0
        %808 = vmatpush1.msra.mxu0 %v688
        %809 = vmatprep.subr.mxu0 0.0
        %810 = vmatpush1.msra.mxu0 %v687
        %811 = vmatprep.subr.mxu0 0.0
        %812 = vmatpush1.msra.mxu0 %v686
        %813 = vmatprep.subr.mxu0 0.0
        %814 = vmatpush2.msra.mxu0 0.0
        %815 = vmatprep.subr.mxu0 0.0
        %816 = vmatpush2.msra.mxu0 0.0
        %817 = vmatprep.subr.mxu0 0.0
        %818 = vmatpush2.msra.mxu0 0.0
        %819 = vmatprep.subr.mxu0 0.0
        %820 = vmatpush2.msra.mxu0 0.0
        %821 = vmatprep.subr.mxu0 0.0
        %822 = vmatpush2.msra.mxu0 0.0
        %823 = vmatprep.subr.mxu0 0.0
        %824 = vmatpush2.msra.mxu0 0.0
        %825 = vmatprep.subr.mxu0 0.0
        %826 = vmatpush2.msra.mxu0 0.0
        %827 = vmatprep.subr.mxu0 0.0
        %828 = vmatpush2.msra.mxu0 0.0
        %829 = vmatprep.subr.mxu0 0.0
        %830 = vmatpush2.msra.mxu0 0.0
        %831 = vmatprep.subr.mxu0 0.0
        %832 = vmatpush2.msra.mxu0 0.0
        %833 = vmatprep.subr.mxu0 0.0
        %834 = vmatpush2.msra.mxu0 0.0
        %835 = vmatprep.subr.mxu0 0.0
        %836 = vmatpush2.msra.mxu0 0.0
        %837 = vmatprep.subr.mxu0 0.0
        %838 = vmatpush2.msra.mxu0 0.0
        %839 = vmatprep.subr.mxu0 0.0
        %840 = vmatpush2.msra.mxu0 0.0
        %841 = vmatprep.subr.mxu0 0.0
        %842 = vmatpush2.msra.mxu0 0.0
        %843 = vmatprep.subr.mxu0 0.0
        %844 = vmatpush2.msra.mxu0 0.0
        %845 = vmatprep.mubr.f32.mxu0 0.0
        %846 = vmatmul.mubr.f32.gmra.mxu0 %v776
        %v847 = vpop.f32.mrf.mxu0
        %v848 = vadd.f32 %v767, %v847
        %v849 = vpop.f32.mrf.mxu0
        %850 = vmatprep.mubr.f32.mxu0 0.0
        %851 = vmatmul.mubr.f32.gmra.mxu0 %v779
        %v852 = vpop.f32.mrf.mxu0
        %v853 = vadd.f32 %v772, %v852
        %v854 = vpop.f32.mrf.mxu0
        %855 = vdwg.mxu0
        %v856 = vrot.slane %v678, 1
        %v857 = vrot.slane %v679, 1
        %v858 = vsel %vm570, %v856, %v857
        %v859 = vsel %vm570, %v857, %v856
        %v860 = vsel %vm573, %v858, 0.0
        %v861 = vsel %vm574, %v859, 0.0
        %v862 = vld [vmem:[%s577] sm:$0xff]
        %v863 = vld [vmem:[%s577 + $0x8] sm:$0xff]
        %v864 = vld [vmem:[%s577 + $0x10] sm:$0xff]
        %v865 = vld [vmem:[%s577 + $0x18] sm:$0xff]
        %v867 = vsel %vm405, %v860, 0
        %v870 = vsel %vm405, %v861, 0
        %872 = vmatprep.subr.mxu0 0.0
        %873 = vmatpush1.msra.mxu0 0.0
        %874 = vmatprep.subr.mxu0 0.0
        %875 = vmatpush1.msra.mxu0 0.0
        %876 = vmatprep.subr.mxu0 0.0
        %877 = vmatpush1.msra.mxu0 0.0
        %878 = vmatprep.subr.mxu0 0.0
        %879 = vmatpush1.msra.mxu0 0.0
        %880 = vmatprep.subr.mxu0 0.0
        %881 = vmatpush1.msra.mxu0 0.0
        %882 = vmatprep.subr.mxu0 0.0
        %883 = vmatpush1.msra.mxu0 0.0
        %884 = vmatprep.subr.mxu0 0.0
        %885 = vmatpush1.msra.mxu0 0.0
        %886 = vmatprep.subr.mxu0 0.0
        %887 = vmatpush1.msra.mxu0 0.0
        %888 = vmatprep.subr.mxu0 0.0
        %889 = vmatpush1.msra.mxu0 0.0
        %890 = vmatprep.subr.mxu0 0.0
        %891 = vmatpush1.msra.mxu0 0.0
        %892 = vmatprep.subr.mxu0 0.0
        %893 = vmatpush1.msra.mxu0 0.0
        %894 = vmatprep.subr.mxu0 0.0
        %895 = vmatpush1.msra.mxu0 0.0
        %896 = vmatprep.subr.mxu0 0.0
        %897 = vmatpush1.msra.mxu0 %v865
        %898 = vmatprep.subr.mxu0 0.0
        %899 = vmatpush1.msra.mxu0 %v864
        %900 = vmatprep.subr.mxu0 0.0
        %901 = vmatpush1.msra.mxu0 %v863
        %902 = vmatprep.subr.mxu0 0.0
        %903 = vmatpush1.msra.mxu0 %v862
        %904 = vmatprep.subr.mxu0 0.0
        %905 = vmatpush2.msra.mxu0 0.0
        %906 = vmatprep.subr.mxu0 0.0
        %907 = vmatpush2.msra.mxu0 0.0
        %908 = vmatprep.subr.mxu0 0.0
        %909 = vmatpush2.msra.mxu0 0.0
        %910 = vmatprep.subr.mxu0 0.0
        %911 = vmatpush2.msra.mxu0 0.0
        %912 = vmatprep.subr.mxu0 0.0
        %913 = vmatpush2.msra.mxu0 0.0
        %914 = vmatprep.subr.mxu0 0.0
        %915 = vmatpush2.msra.mxu0 0.0
        %916 = vmatprep.subr.mxu0 0.0
        %917 = vmatpush2.msra.mxu0 0.0
        %918 = vmatprep.subr.mxu0 0.0
        %919 = vmatpush2.msra.mxu0 0.0
        %920 = vmatprep.subr.mxu0 0.0
        %921 = vmatpush2.msra.mxu0 0.0
        %922 = vmatprep.subr.mxu0 0.0
        %923 = vmatpush2.msra.mxu0 0.0
        %924 = vmatprep.subr.mxu0 0.0
        %925 = vmatpush2.msra.mxu0 0.0
        %926 = vmatprep.subr.mxu0 0.0
        %927 = vmatpush2.msra.mxu0 0.0
        %928 = vmatprep.subr.mxu0 0.0
        %929 = vmatpush2.msra.mxu0 0.0
        %930 = vmatprep.subr.mxu0 0.0
        %931 = vmatpush2.msra.mxu0 0.0
        %932 = vmatprep.subr.mxu0 0.0
        %933 = vmatpush2.msra.mxu0 0.0
        %934 = vmatprep.subr.mxu0 0.0
        %935 = vmatpush2.msra.mxu0 0.0
        %936 = vmatprep.mubr.f32.mxu0 0.0
        %937 = vmatmul.mubr.f32.gmra.mxu0 %v867
        %v938 = vpop.f32.mrf.mxu0
        %v939 = vadd.f32 0.0, %v938
        %v940 = vpop.f32.mrf.mxu0
        %941 = vmatprep.mubr.f32.mxu0 0.0
        %942 = vmatmul.mubr.f32.gmra.mxu0 %v870
        %v943 = vpop.f32.mrf.mxu0
        %v944 = vadd.f32 0.0, %v943
        %v945 = vpop.f32.mrf.mxu0
        %946 = vdwg.mxu0
        %v947 = vadd.f32 %v848, %v939
        %v948 = vadd.f32 %v853, %v944
        %v949 = vadd.f32 %v947, %v669
        %v950 = vadd.f32 %v948, %v669
        %v951 = vmax.f32 %v949, 0.0
        %v952 = vmax.f32 %v950, 0.0
        %s953 = scalar_lea.vmem %s366, 16 [#allocation6]
        %954 = vst.msk [vmem:[%s953] sm:$0xff] %vm405, %v951
        %955 = vst.msk [vmem:[%s953 + $0x8] sm:$0xff] %vm405, %v952
        %s956 = sand.u32 %s157, 1
        %s957 = scalar_lea.sflag [#allocation5], %s956
        %s958 = sand.u32 %s157, 1
        %s959 = smul.addr %s958, 32
        %s960 = scalar_lea.vmem [#allocation6], %s959
        // Predicated region
        $region79: #{_locker_forward.3} parent=69 // pred_check
          %p961 = pneg %p167
        $region80: #{_locker_forward.3} parent=69 // pred_check_branch
          %963 = sbr.rel (%p961) target = $region82
        $region81: #{_locker_forward.3} parent=69 // pred_region
          #allocation10 [shape = 'u32[6]{0}', space=smem, size = 0x18, scoped, tag = 'DMA stride descriptor']
          %s964 = sadd.s32 %s25, 2
          %s965 = smul.u32 2, %s26
          %s967 = ssub.s32 512, 512
          %968 = vsyncadd %s957, %s967
          %s969 = smul.addr %s964, 2
          %s970 = smul.addr %s965, 8
          %s971 = sadd.s32 %s969, %s970
          %s972 = smul.addr %s971, 128
          %s973 = scalar_lea.hbm %s4, %s972
          %s975 = sshll.u32 1, 14
          %s976 = sxor.u32 4294967295, %s975
          %s979 = sshll.u32 7, 18
          %s980 = sxor.u32 4294967295, %s979
          %s981 = sand.u32 0, %s980
          %s983 = sor.u32 %s981, 0
          %s984 = sshll.u32 %s960, 4
          %s985 = int_to_ptr.vmem [resolvable:$true] %s984
          %991 = sst [smem:[#allocation10]] 256
          %s992 = scalar_lea.smem [#allocation10], 1
          %993 = sst [smem:[%s992]] 1024
          %s994 = scalar_lea.smem [#allocation10], 2
          %995 = sst [smem:[%s994]] 2
          %s996 = scalar_lea.smem [#allocation10], 3
          %997 = sst [smem:[%s996]] 128
          %s998 = scalar_lea.smem [#allocation10], 4
          %999 = sst [smem:[%s998]] 128
          %s1000 = scalar_lea.smem [#allocation10], 5
          %1001 = sst [smem:[%s1000]] 8
          %1003 = dma.general %s985, 512, %s973, %s957, 131072, [#allocation10], %s983, 0
        $region82: #{_locker_forward.3} parent=69 // pred_fallthru
          _
      $region70: #{_locker_forward.3} parent=5 // pred_fallthru
        _
      %p1004 = scmp.le.s32.totalorder 2, %s16
      // Predicated region
      $region83: #{_locker_forward.3} parent=5 // pred_check
        %p1005 = pneg %p1004
      $region84: #{_locker_forward.3} parent=5 // pred_check_branch
        %1007 = sbr.rel (%p1005) target = $region86
      $region85: #{_locker_forward.3} parent=5 // pred_region
        %s1008 = ssub.s32 %s16, 2
        // Predicated region
        $region87: #{_locker_forward.3} parent=85 // pred_check
          %p1009 = pneg %p173
        $region88: #{_locker_forward.3} parent=85 // pred_check_branch
          %1011 = sbr.rel (%p1009) target = $region90
        $region89: #{_locker_forward.3} parent=85 // pred_region
          %s1012 = sand.u32 %s158, 1
          %s1013 = scalar_lea.sflag [#allocation5], %s1012
          %s1014 = sand.u32 %s158, 1
          %s1015 = smul.addr %s1014, 32
          %s1016 = scalar_lea.vmem [#allocation6], %s1015
          %1017 = dma.done %s1013, 512
        $region90: #{_locker_forward.3} parent=85 // pred_fallthru
          _
      $region86: #{_locker_forward.3} parent=5 // pred_fallthru
        _
    $region6: #{_locker_forward.3} parent=1 // loop_footer
      %s20 = sadd.s32 1, %s16
    $region7: #{_locker_forward.3} parent=1 // loop_footer_branch
      %15 = sbr.rel target = $region3
    $region8: #{_locker_forward.3} parent=1 // loop_exit
      _
    %1018 = vsyncpa [#allocation4], 1
    %s1019 = scalar_lea.sflag [#allocation4], 1
    %1020 = vsyncpa %s1019, 1
    %1021 = vsyncpa [#allocation5], 1
    %s1022 = scalar_lea.sflag [#allocation5], 1
    %1023 = vsyncpa %s1022, 1

</llo_original>
